<compile_context>
chip_gen: v5e
topology: v5e:2x2
jax: 0.10.0
libtpu: 0.0.40
codegen_flags: <defaults>
</compile_context>

<pallas_src>
import functools
import math

import jax
import jax.numpy as jnp
from jax.experimental import pallas as pl
from jax.experimental.pallas import tpu as pltpu


# ---------------------------------------------------------------------------
# Fused kernel: one (batch, L-tile) per grid step.  Weights / biases are
# resident full-array VMEM blocks; projected K/V are cached in VMEM scratch.
# ---------------------------------------------------------------------------
def _fused_mha_kernel(q_ref, k_ref, v_ref,
                      wq_ref, wk_ref, wv_ref, wo_ref,
                      bq_ref, bk_ref, bv_ref, bo_ref,
                      *rest,
                      nhead, head_dim, matmul_dtype, need_weights):
    if need_weights:
        (out_ref, attnw_ref,
         kproj_ref, vproj_ref, out_acc_ref, w_acc_ref) = rest
    else:
        out_ref, kproj_ref, vproj_ref, out_acc_ref = rest
        attnw_ref = None
        w_acc_ref = None

    f32 = jnp.float32
    md = matmul_dtype  # MXU operand dtype (bf16 default), f32 accumulation

    # K/V projections: only on the first L-tile of each batch element; the
    # projected (S, E) activations are cached in VMEM scratch in `md` dtype.
    @pl.when(pl.program_id(1) == 0)
    def _():
        k = jnp.dot(k_ref[...].astype(md), wk_ref[...],
                    preferred_element_type=f32) + bk_ref[...]      # (S, E)
        v = jnp.dot(v_ref[...].astype(md), wv_ref[...],
                    preferred_element_type=f32) + bv_ref[...]      # (S, E)
        kproj_ref[...] = k.astype(md)
        vproj_ref[...] = v.astype(md)

    # Q projection for this L-tile (1/sqrt(Dh) scale is folded into Wq / bq;
    # weights are pre-transposed (E_in, E_out) so the MXU RHS is lane-major).
    q = jnp.dot(q_ref[...].astype(md), wq_ref[...],
                preferred_element_type=f32) + bq_ref[...]          # (Lt, E) f32
    q = q.astype(md)                                               # cast once
    kp = kproj_ref[...]                                            # (S, E)  md
    vp = vproj_ref[...]                                            # (S, E)  md
    wo = wo_ref[...]                                               # (E, E)  md

    out_acc_ref[...] = jnp.zeros_like(out_acc_ref)                 # (Lt, E) f32
    if need_weights:
        w_acc_ref[...] = jnp.zeros_like(w_acc_ref)                 # (Lt, S) f32

    # TODO(synk): additive attn_mask / key_padding_mask not wired in (None path only).
    # TODO(synk): attention dropout not implemented (eval / p=0.0 path only).
    for h in range(nhead):
        sl = slice(h * head_dim, (h + 1) * head_dim)
        s = jnp.einsum("ld,sd->ls", q[:, sl], kp[:, sl],
                       preferred_element_type=f32)                 # (Lt, S)
        m = jnp.max(s, axis=-1, keepdims=True)
        e_ = jnp.exp(s - m)
        denom = jnp.sum(e_, axis=-1, keepdims=True)
        p = e_ * pl.reciprocal(denom, approx=True)                 # (Lt, S) f32

        ctx = jnp.dot(p.astype(md), vp[:, sl],
                      preferred_element_type=f32)                  # (Lt, Dh)
        # out = concat_h(ctx_h) @ Wo  ==  sum_h ctx_h @ Wo[h*Dh:(h+1)*Dh, :]
        out_acc_ref[...] += jnp.dot(ctx.astype(md), wo[sl, :],
                                    preferred_element_type=f32)
        if need_weights:
            w_acc_ref[...] += p

    # single lane-dense store per grid step
    out_ref[...] = (out_acc_ref[...] + bo_ref[...]).astype(out_ref.dtype)
    if need_weights:
        attnw_ref[...] = (w_acc_ref[...] * (1.0 / nhead)).astype(attnw_ref.dtype)


def _pick_l_tile(length, cap=256):
    # Keep the whole L when small; otherwise the largest clean divisor <= cap.
    # If no clean divisor exists we still use `cap` and a cdiv grid (the last
    # partial tile is handled by Pallas' masked boundary stores), instead of
    # falling back to tiny 8-row tiles or the full (VMEM-busting) length.
    if length <= cap:
        return length
    for t in (256, 128, 64, 32):
        if length % t == 0:
            return t
    return cap


def _vmem_limit_bytes(l_tile, src_len, e, md_size, need_weights):
    f32 = 4
    weights = 4 * e * e * md_size * 2 + 4 * e * f32 * 2            # dbl-buffered
    inputs = (l_tile * e + 2 * src_len * e) * f32 * 2              # q,k,v blocks
    outputs = l_tile * e * f32 * 2
    scratch = 2 * src_len * e * md_size + l_tile * e * f32
    if need_weights:
        outputs += l_tile * src_len * f32 * 2
        scratch += l_tile * src_len * f32
    interm = 4 * l_tile * src_len * f32 + 2 * l_tile * e * f32     # s/exp/p headroom
    total = weights + inputs + outputs + scratch + interm
    return int(min(max(total * 5 // 4, 32 * 1024 * 1024), 96 * 1024 * 1024))


def _mha_fused(query, key, value, params, nhead, head_dim, matmul_dtype,
               need_weights):
    n, tgt_len, e = query.shape
    src_len = key.shape[1]
    l_tile = _pick_l_tile(tgt_len)
    n_tiles = pl.cdiv(tgt_len, l_tile)
    wq, wk, wv, wo, bq, bk, bv, bo = params
    md_size = jnp.dtype(matmul_dtype).itemsize

    kernel = functools.partial(
        _fused_mha_kernel, nhead=nhead, head_dim=head_dim,
        matmul_dtype=matmul_dtype, need_weights=need_weights)

    out_shape = [jax.ShapeDtypeStruct((n, tgt_len, e), jnp.float32)]
    out_specs = [pl.BlockSpec((None, l_tile, e), lambda b, t: (b, t, 0))]
    scratch = [pltpu.VMEM((src_len, e), matmul_dtype),      # cached K projection
               pltpu.VMEM((src_len, e), matmul_dtype),      # cached V projection
               pltpu.VMEM((l_tile, e), jnp.float32)]        # output accumulator
    if need_weights:
        out_shape.append(jax.ShapeDtypeStruct((n, tgt_len, src_len), jnp.float32))
        out_specs.append(
            pl.BlockSpec((None, l_tile, src_len), lambda b, t: (b, t, 0)))
        scratch.append(pltpu.VMEM((l_tile, src_len), jnp.float32))  # weight acc

    results = pl.pallas_call(
        kernel,
        out_shape=tuple(out_shape),
        grid=(n, n_tiles),
        in_specs=[
            pl.BlockSpec((None, l_tile, e), lambda b, t: (b, t, 0)),   # query
            pl.BlockSpec((None, src_len, e), lambda b, t: (b, 0, 0)),  # key
            pl.BlockSpec((None, src_len, e), lambda b, t: (b, 0, 0)),  # value
            pl.BlockSpec((e, e), lambda b, t: (0, 0)),                 # Wq^T*scale
            pl.BlockSpec((e, e), lambda b, t: (0, 0)),                 # Wk^T
            pl.BlockSpec((e, e), lambda b, t: (0, 0)),                 # Wv^T
            pl.BlockSpec((e, e), lambda b, t: (0, 0)),                 # Wo^T
            pl.BlockSpec((1, e), lambda b, t: (0, 0)),                 # bq*scale
            pl.BlockSpec((1, e), lambda b, t: (0, 0)),                 # bk
            pl.BlockSpec((1, e), lambda b, t: (0, 0)),                 # bv
            pl.BlockSpec((1, e), lambda b, t: (0, 0)),                 # bo
        ],
        out_specs=tuple(out_specs),
        scratch_shapes=tuple(scratch),
        compiler_params=pltpu.CompilerParams(
            # batch axis parallel (megacore); L-tile axis "arbitrary" so the
            # projected K/V scratch persists across tiles of the same batch.
            dimension_semantics=("parallel", "arbitrary"),
            vmem_limit_bytes=_vmem_limit_bytes(
                l_tile, src_len, e, md_size, need_weights)),
    )(query, key, value, wq, wk, wv, wo, bq, bk, bv, bo)

    if need_weights:
        return results[0], results[1]
    return results[0], None


# ---------------------------------------------------------------------------
# Module wrapper (parameter setup only; forward is one pallas_call)
# ---------------------------------------------------------------------------
class MultiheadAttentionPallas:
    """Pallas equivalent of speechbrain.nnet.attention.MultiheadAttention
    (batch-first wrapper around nn.MultiheadAttention, dropout=0, no masks)."""

    def __init__(self, nhead, d_model, key, bias=True, matmul_dtype=jnp.bfloat16):
        assert d_model % nhead == 0
        self.nhead = nhead
        self.d_model = d_model
        self.head_dim = d_model // nhead
        # bf16 MXU operands by default (f32 accumulation kept); pass
        # matmul_dtype=jnp.float32 to reproduce the PyTorch f32 numerics.
        self.matmul_dtype = matmul_dtype
        scale = float(self.head_dim) ** -0.5

        k1, k2 = jax.random.split(key)
        e = d_model
        # PyTorch-layout parameters (in_proj_weight (3E,E), out_proj (E,E)),
        # xavier-uniform-like deterministic init, biases zero.
        bound_in = math.sqrt(6.0 / (3 * d_model + d_model))
        in_proj_weight = jax.random.uniform(
            k1, (3 * d_model, d_model), jnp.float32, -bound_in, bound_in)
        in_proj_bias = jnp.zeros((3 * d_model,), jnp.float32)
        bound_out = math.sqrt(6.0 / (2 * d_model))
        out_proj_weight = jax.random.uniform(
            k2, (d_model, d_model), jnp.float32, -bound_out, bound_out)
        out_proj_bias = jnp.zeros((d_model,), jnp.float32)

        # Pre-transpose to (E_in, E_out), fold 1/sqrt(Dh) into the Q path, and
        # store the matmul weights directly in the MXU operand dtype (halves
        # weight VMEM / DMA when bf16).  Biases stay f32 (added post-accum).
        self.wq = (in_proj_weight[:e].T * scale).astype(matmul_dtype)
        self.wk = in_proj_weight[e:2 * e].T.astype(matmul_dtype)
        self.wv = in_proj_weight[2 * e:].T.astype(matmul_dtype)
        self.wo = out_proj_weight.T.astype(matmul_dtype)
        self.bq = (in_proj_bias[:e] * scale).reshape(1, e)
        self.bk = in_proj_bias[e:2 * e].reshape(1, e)
        self.bv = in_proj_bias[2 * e:].reshape(1, e)
        self.bo = out_proj_bias.reshape(1, e)

    def __call__(self, query, key, value, need_weights=True):
        params = (self.wq, self.wk, self.wv, self.wo,
                  self.bq, self.bk, self.bv, self.bo)
        return _mha_fused(query, key, value, params,
                          self.nhead, self.head_dim, self.matmul_dtype,
                          need_weights)


# ---------------------------------------------------------------------------
# Pure-JAX reference (correctness check only; uses the same stored weights)
# ---------------------------------------------------------------------------
def _reference(query, key, value, mha):
    hp = jax.lax.Precision.HIGHEST
    wq = mha.wq.astype(jnp.float32)
    wk = mha.wk.astype(jnp.float32)
    wv = mha.wv.astype(jnp.float32)
    wo = mha.wo.astype(jnp.float32)
    q = jnp.einsum("nle,ef->nlf", query, wq, precision=hp) + mha.bq
    k = jnp.einsum("nse,ef->nsf", key, wk, precision=hp) + mha.bk
    v = jnp.einsum("nse,ef->nsf", value, wv, precision=hp) + mha.bv
    n, tgt_len, e = q.shape
    src_len = k.shape[1]
    h, dh = mha.nhead, mha.head_dim
    qh = q.reshape(n, tgt_len, h, dh)
    kh = k.reshape(n, src_len, h, dh)
    vh = v.reshape(n, src_len, h, dh)
    scores = jnp.einsum("nlhd,nshd->nhls", qh, kh, precision=hp)
    p = jax.nn.softmax(scores, axis=-1)
    ctx = jnp.einsum("nhls,nshd->nlhd", p, vh, precision=hp).reshape(n, tgt_len, e)
    out = jnp.einsum("nle,ef->nlf", ctx, wo, precision=hp) + mha.bo
    return out, p.mean(axis=1)


if __name__ == "__main__":
    key = jax.random.PRNGKey(0)
    kp1, kp2, kq, kk, kv = jax.random.split(key, 5)

    # --- Test 1: small shapes (E < 128 lanes, single L tile) ----------------
    N, L, S, E, H = 2, 8, 8, 32, 4
    mha = MultiheadAttentionPallas(nhead=H, d_model=E, key=kp1)
    query = jax.random.normal(kq, (N, L, E), jnp.float32)
    k_in = jax.random.normal(kk, (N, S, E), jnp.float32)
    v_in = jax.random.normal(kv, (N, S, E), jnp.float32)

    out, attn = mha(query, k_in, v_in)
    jax.block_until_ready((out, attn))
    assert out.shape == (N, L, E), out.shape
    assert attn.shape == (N, L, S), attn.shape
    # softmax averaged over heads -> rows sum to ~1 (approx reciprocal)
    assert jnp.allclose(attn.sum(-1), 1.0, atol=1e-2)
    out_ref, attn_ref = _reference(query, k_in, v_in, mha)
    assert jnp.allclose(out, out_ref, atol=3e-2, rtol=3e-2), \
        float(jnp.max(jnp.abs(out - out_ref)))
    assert jnp.allclose(attn, attn_ref, atol=3e-2, rtol=3e-2), \
        float(jnp.max(jnp.abs(attn - attn_ref)))

    # --- Test 2: lane-dense E, multiple L tiles (exercises K/V caching) -----
    N2, L2, S2, E2, H2 = 2, 512, 64, 128, 4
    mha2 = MultiheadAttentionPallas(nhead=H2, d_model=E2, key=kp2)
    q2 = jax.random.normal(kq, (N2, L2, E2), jnp.float32)
    k2 = jax.random.normal(kk, (N2, S2, E2), jnp.float32)
    v2 = jax.random.normal(kv, (N2, S2, E2), jnp.float32)
    out2, attn2 = mha2(q2, k2, v2)
    jax.block_until_ready((out2, attn2))
    out2_ref, attn2_ref = _reference(q2, k2, v2, mha2)
    assert jnp.allclose(out2, out2_ref, atol=3e-2, rtol=3e-2), \
        float(jnp.max(jnp.abs(out2 - out2_ref)))
    assert jnp.allclose(attn2, attn2_ref, atol=3e-2, rtol=3e-2), \
        float(jnp.max(jnp.abs(attn2 - attn2_ref)))

    # --- Test 3: need_weights=False fast path (no attn-weight writeback) ----
    out3, attn3 = mha2(q2, k2, v2, need_weights=False)
    jax.block_until_ready(out3)
    assert attn3 is None
    assert jnp.allclose(out3, out2, atol=1e-5, rtol=1e-5)

    print("KERNEL_OK")
</pallas_src>

<mosaic_0001>
module attributes {stable_mosaic.version = 11 : i64} {
  func.func @_fused_mha_kernel(%arg0: i32, %arg1: i32, %arg2: memref<1x8x32xf32, #tpu.memory_space<vmem>>, %arg3: memref<1x8x32xf32, #tpu.memory_space<vmem>>, %arg4: memref<1x8x32xf32, #tpu.memory_space<vmem>>, %arg5: memref<32x32xbf16, #tpu.memory_space<vmem>>, %arg6: memref<32x32xbf16, #tpu.memory_space<vmem>>, %arg7: memref<32x32xbf16, #tpu.memory_space<vmem>>, %arg8: memref<32x32xbf16, #tpu.memory_space<vmem>>, %arg9: memref<1x32xf32, #tpu.memory_space<vmem>>, %arg10: memref<1x32xf32, #tpu.memory_space<vmem>>, %arg11: memref<1x32xf32, #tpu.memory_space<vmem>>, %arg12: memref<1x32xf32, #tpu.memory_space<vmem>>, %arg13: memref<1x8x32xf32, #tpu.memory_space<vmem>>, %arg14: memref<1x8x8xf32, #tpu.memory_space<vmem>>, %arg15: memref<8x32xbf16, #tpu.memory_space<vmem>>, %arg16: memref<8x32xbf16, #tpu.memory_space<vmem>>, %arg17: memref<8x32xf32, #tpu.memory_space<vmem>>, %arg18: memref<8x8xf32, #tpu.memory_space<vmem>>) attributes {dimension_semantics = [#tpu.dimension_semantics<parallel>, #tpu.dimension_semantics<arbitrary>], iteration_bounds = array<i64: 2, 1>, scalar_prefetch = 0 : i64, scratch_operands = 4 : i64, tpu.core_type = #tpu.core_type<tc>, window_params = [{transform_indices = @transform_0, window_bounds = array<i64: 1, 8, 32>}, {transform_indices = @transform_1, window_bounds = array<i64: 1, 8, 32>}, {transform_indices = @transform_2, window_bounds = array<i64: 1, 8, 32>}, {pipeline_mode = #tpu.pipeline_mode<synchronous>, transform_indices = @transform_3, window_bounds = array<i64: 32, 32>}, {pipeline_mode = #tpu.pipeline_mode<synchronous>, transform_indices = @transform_4, window_bounds = array<i64: 32, 32>}, {pipeline_mode = #tpu.pipeline_mode<synchronous>, transform_indices = @transform_5, window_bounds = array<i64: 32, 32>}, {pipeline_mode = #tpu.pipeline_mode<synchronous>, transform_indices = @transform_6, window_bounds = array<i64: 32, 32>}, {pipeline_mode = #tpu.pipeline_mode<synchronous>, transform_indices = @transform_7, window_bounds = array<i64: 1, 32>}, {pipeline_mode = #tpu.pipeline_mode<synchronous>, transform_indices = @transform_8, window_bounds = array<i64: 1, 32>}, {pipeline_mode = #tpu.pipeline_mode<synchronous>, transform_indices = @transform_9, window_bounds = array<i64: 1, 32>}, {pipeline_mode = #tpu.pipeline_mode<synchronous>, transform_indices = @transform_10, window_bounds = array<i64: 1, 32>}, {transform_indices = @transform_11, window_bounds = array<i64: 1, 8, 32>}, {transform_indices = @transform_12, window_bounds = array<i64: 1, 8, 8>}]} {
    %c0_i32 = arith.constant 0 : i32
    %0 = arith.cmpi eq, %arg1, %c0_i32 : i32
    %1 = arith.extui %0 : i1 to i32
    %c0_i32_0 = arith.constant 0 : i32
    %2 = arith.cmpi ne, %1, %c0_i32_0 : i32
    scf.if %2 {
      %c0_84 = arith.constant 0 : index
      %c0_85 = arith.constant 0 : index
      %c0_86 = arith.constant 0 : index
      %132 = vector.load %arg3[%c0_84, %c0_85, %c0_86] : memref<1x8x32xf32, #tpu.memory_space<vmem>>, vector<1x8x32xf32>
      %133 = vector.shape_cast %132 : vector<1x8x32xf32> to vector<8x32xf32>
      %134 = arith.truncf %133 : vector<8x32xf32> to vector<8x32xbf16>
      %c0_87 = arith.constant 0 : index
      %c0_88 = arith.constant 0 : index
      %135 = vector.load %arg6[%c0_87, %c0_88] : memref<32x32xbf16, #tpu.memory_space<vmem>>, vector<32x32xbf16>
      %cst_89 = arith.constant dense<0.000000e+00> : vector<8x32xf32>
      %136 = tpu.matmul %134, %135, %cst_89 {dimension_numbers = #tpu.dot_dimension_numbers<[1], [0], [0], [1], [0, 0, 1, 1], [], []>} : vector<8x32xbf16>, vector<32x32xbf16>, vector<8x32xf32> -> vector<8x32xf32>
      %c0_90 = arith.constant 0 : index
      %c0_91 = arith.constant 0 : index
      %137 = vector.load %arg10[%c0_90, %c0_91] : memref<1x32xf32, #tpu.memory_space<vmem>>, vector<1x32xf32>
      %138 = vector.broadcast %137 : vector<1x32xf32> to vector<8x32xf32>
      %139 = arith.addf %136, %138 : vector<8x32xf32>
      %c0_92 = arith.constant 0 : index
      %c0_93 = arith.constant 0 : index
      %c0_94 = arith.constant 0 : index
      %140 = vector.load %arg4[%c0_92, %c0_93, %c0_94] : memref<1x8x32xf32, #tpu.memory_space<vmem>>, vector<1x8x32xf32>
      %141 = vector.shape_cast %140 : vector<1x8x32xf32> to vector<8x32xf32>
      %142 = arith.truncf %141 : vector<8x32xf32> to vector<8x32xbf16>
      %c0_95 = arith.constant 0 : index
      %c0_96 = arith.constant 0 : index
      %143 = vector.load %arg7[%c0_95, %c0_96] : memref<32x32xbf16, #tpu.memory_space<vmem>>, vector<32x32xbf16>
      %cst_97 = arith.constant dense<0.000000e+00> : vector<8x32xf32>
      %144 = tpu.matmul %142, %143, %cst_97 {dimension_numbers = #tpu.dot_dimension_numbers<[1], [0], [0], [1], [0, 0, 1, 1], [], []>} : vector<8x32xbf16>, vector<32x32xbf16>, vector<8x32xf32> -> vector<8x32xf32>
      %c0_98 = arith.constant 0 : index
      %c0_99 = arith.constant 0 : index
      %145 = vector.load %arg11[%c0_98, %c0_99] : memref<1x32xf32, #tpu.memory_space<vmem>>, vector<1x32xf32>
      %146 = vector.broadcast %145 : vector<1x32xf32> to vector<8x32xf32>
      %147 = arith.addf %144, %146 : vector<8x32xf32>
      %148 = arith.truncf %139 : vector<8x32xf32> to vector<8x32xbf16>
      %c0_100 = arith.constant 0 : index
      %c0_101 = arith.constant 0 : index
      %149 = vector.load %arg15[%c0_100, %c0_101] : memref<8x32xbf16, #tpu.memory_space<vmem>>, vector<8x32xbf16>
      tpu.vector_store %arg15[%c0_100, %c0_101], %148 {strides = array<i32>} : memref<8x32xbf16, #tpu.memory_space<vmem>>, vector<8x32xbf16>,
      %150 = arith.truncf %147 : vector<8x32xf32> to vector<8x32xbf16>
      %c0_102 = arith.constant 0 : index
      %c0_103 = arith.constant 0 : index
      %151 = vector.load %arg16[%c0_102, %c0_103] : memref<8x32xbf16, #tpu.memory_space<vmem>>, vector<8x32xbf16>
      tpu.vector_store %arg16[%c0_102, %c0_103], %150 {strides = array<i32>} : memref<8x32xbf16, #tpu.memory_space<vmem>>, vector<8x32xbf16>,
    } else {
    }
    %c0 = arith.constant 0 : index
    %c0_1 = arith.constant 0 : index
    %c0_2 = arith.constant 0 : index
    %3 = vector.load %arg2[%c0, %c0_1, %c0_2] : memref<1x8x32xf32, #tpu.memory_space<vmem>>, vector<1x8x32xf32>
    %4 = vector.shape_cast %3 : vector<1x8x32xf32> to vector<8x32xf32>
    %5 = arith.truncf %4 : vector<8x32xf32> to vector<8x32xbf16>
    %c0_3 = arith.constant 0 : index
    %c0_4 = arith.constant 0 : index
    %6 = vector.load %arg5[%c0_3, %c0_4] : memref<32x32xbf16, #tpu.memory_space<vmem>>, vector<32x32xbf16>
    %cst = arith.constant dense<0.000000e+00> : vector<8x32xf32>
    %7 = tpu.matmul %5, %6, %cst {dimension_numbers = #tpu.dot_dimension_numbers<[1], [0], [0], [1], [0, 0, 1, 1], [], []>} : vector<8x32xbf16>, vector<32x32xbf16>, vector<8x32xf32> -> vector<8x32xf32>
    %c0_5 = arith.constant 0 : index
    %c0_6 = arith.constant 0 : index
    %8 = vector.load %arg9[%c0_5, %c0_6] : memref<1x32xf32, #tpu.memory_space<vmem>>, vector<1x32xf32>
    %9 = vector.broadcast %8 : vector<1x32xf32> to vector<8x32xf32>
    %10 = arith.addf %7, %9 : vector<8x32xf32>
    %11 = arith.truncf %10 : vector<8x32xf32> to vector<8x32xbf16>
    %c0_7 = arith.constant 0 : index
    %c0_8 = arith.constant 0 : index
    %12 = vector.load %arg15[%c0_7, %c0_8] : memref<8x32xbf16, #tpu.memory_space<vmem>>, vector<8x32xbf16>
    %c0_9 = arith.constant 0 : index
    %c0_10 = arith.constant 0 : index
    %13 = vector.load %arg16[%c0_9, %c0_10] : memref<8x32xbf16, #tpu.memory_space<vmem>>, vector<8x32xbf16>
    %c0_11 = arith.constant 0 : index
    %c0_12 = arith.constant 0 : index
    %14 = vector.load %arg8[%c0_11, %c0_12] : memref<32x32xbf16, #tpu.memory_space<vmem>>, vector<32x32xbf16>
    %cst_13 = arith.constant 0.000000e+00 : f32
    %15 = vector.broadcast %cst_13 : f32 to vector<8x32xf32>
    %c0_14 = arith.constant 0 : index
    %c0_15 = arith.constant 0 : index
    %16 = vector.load %arg17[%c0_14, %c0_15] : memref<8x32xf32, #tpu.memory_space<vmem>>, vector<8x32xf32>
    tpu.vector_store %arg17[%c0_14, %c0_15], %15 {strides = array<i32>} : memref<8x32xf32, #tpu.memory_space<vmem>>, vector<8x32xf32>,
    %cst_16 = arith.constant 0.000000e+00 : f32
    %17 = vector.broadcast %cst_16 : f32 to vector<8x8xf32>
    %c0_17 = arith.constant 0 : index
    %c0_18 = arith.constant 0 : index
    %18 = vector.load %arg18[%c0_17, %c0_18] : memref<8x8xf32, #tpu.memory_space<vmem>>, vector<8x8xf32>
    tpu.vector_store %arg18[%c0_17, %c0_18], %17 {strides = array<i32>} : memref<8x8xf32, #tpu.memory_space<vmem>>, vector<8x8xf32>,
    %19 = vector.extract_strided_slice %11 {offsets = [0, 0], sizes = [8, 8], strides = [1, 1]} : vector<8x32xbf16> to vector<8x8xbf16>
    %20 = vector.extract_strided_slice %12 {offsets = [0, 0], sizes = [8, 8], strides = [1, 1]} : vector<8x32xbf16> to vector<8x8xbf16>
    "tpu.trace_start"() <{level = 10 : i32, message = "ld,sd->ls"}> : () -> ()
    %cst_19 = arith.constant dense<0.000000e+00> : vector<8x8xf32>
    %21 = tpu.matmul %19, %20, %cst_19 {dimension_numbers = #tpu.dot_dimension_numbers<[1], [1], [0], [0], [0, 0, 1, 0], [], []>} : vector<8x8xbf16>, vector<8x8xbf16>, vector<8x8xf32> -> vector<8x8xf32>
    "tpu.trace_stop"() : () -> ()
    %cst_20 = arith.constant dense<0xFF800000> : vector<8xf32>
    %22 = vector.multi_reduction <maximumf>, %21, %cst_20 [1] : vector<8x8xf32> to vector<8xf32>
    %23 = vector.shape_cast %22 : vector<8xf32> to vector<8x1xf32>
    %24 = vector.broadcast %23 : vector<8x1xf32> to vector<8x8xf32>
    %25 = arith.subf %21, %24 : vector<8x8xf32>
    %26 = math.exp %25 : vector<8x8xf32>
    %cst_21 = arith.constant dense<0.000000e+00> : vector<8xf32>
    %27 = vector.multi_reduction <add>, %26, %cst_21 [1] : vector<8x8xf32> to vector<8xf32>
    %28 = vector.shape_cast %27 : vector<8xf32> to vector<8x1xf32>
    %29 = tpu.reciprocal %28 {approx = true} : vector<8x1xf32> -> vector<8x1xf32>
    %30 = vector.broadcast %29 : vector<8x1xf32> to vector<8x8xf32>
    %31 = arith.mulf %26, %30 : vector<8x8xf32>
    %32 = arith.truncf %31 : vector<8x8xf32> to vector<8x8xbf16>
    %33 = vector.extract_strided_slice %13 {offsets = [0, 0], sizes = [8, 8], strides = [1, 1]} : vector<8x32xbf16> to vector<8x8xbf16>
    %cst_22 = arith.constant dense<0.000000e+00> : vector<8x8xf32>
    %34 = tpu.matmul %32, %33, %cst_22 {dimension_numbers = #tpu.dot_dimension_numbers<[1], [0], [0], [1], [0, 0, 1, 1], [], []>} : vector<8x8xbf16>, vector<8x8xbf16>, vector<8x8xf32> -> vector<8x8xf32>
    %c0_23 = arith.constant 0 : index
    %c0_24 = arith.constant 0 : index
    %35 = vector.load %arg17[%c0_23, %c0_24] : memref<8x32xf32, #tpu.memory_space<vmem>>, vector<8x32xf32>
    %36 = arith.truncf %34 : vector<8x8xf32> to vector<8x8xbf16>
    %37 = vector.extract_strided_slice %14 {offsets = [0, 0], sizes = [8, 32], strides = [1, 1]} : vector<32x32xbf16> to vector<8x32xbf16>
    %cst_25 = arith.constant dense<0.000000e+00> : vector<8x32xf32>
    %38 = tpu.matmul %36, %37, %cst_25 {dimension_numbers = #tpu.dot_dimension_numbers<[1], [0], [0], [1], [0, 0, 1, 1], [], []>} : vector<8x8xbf16>, vector<8x32xbf16>, vector<8x32xf32> -> vector<8x32xf32>
    %39 = arith.addf %35, %38 : vector<8x32xf32>
    %c0_26 = arith.constant 0 : index
    %c0_27 = arith.constant 0 : index
    %40 = vector.load %arg17[%c0_26, %c0_27] : memref<8x32xf32, #tpu.memory_space<vmem>>, vector<8x32xf32>
    tpu.vector_store %arg17[%c0_26, %c0_27], %39 {strides = array<i32>} : memref<8x32xf32, #tpu.memory_space<vmem>>, vector<8x32xf32>,
    %c0_28 = arith.constant 0 : index
    %c0_29 = arith.constant 0 : index
    %41 = vector.load %arg18[%c0_28, %c0_29] : memref<8x8xf32, #tpu.memory_space<vmem>>, vector<8x8xf32>
    %42 = arith.addf %41, %31 : vector<8x8xf32>
    %c0_30 = arith.constant 0 : index
    %c0_31 = arith.constant 0 : index
    %43 = vector.load %arg18[%c0_30, %c0_31] : memref<8x8xf32, #tpu.memory_space<vmem>>, vector<8x8xf32>
    tpu.vector_store %arg18[%c0_30, %c0_31], %42 {strides = array<i32>} : memref<8x8xf32, #tpu.memory_space<vmem>>, vector<8x8xf32>,
    %44 = vector.extract_strided_slice %11 {offsets = [0, 8], sizes = [8, 8], strides = [1, 1]} : vector<8x32xbf16> to vector<8x8xbf16>
    %45 = vector.extract_strided_slice %12 {offsets = [0, 8], sizes = [8, 8], strides = [1, 1]} : vector<8x32xbf16> to vector<8x8xbf16>
    "tpu.trace_start"() <{level = 10 : i32, message = "ld,sd->ls"}> : () -> ()
    %cst_32 = arith.constant dense<0.000000e+00> : vector<8x8xf32>
    %46 = tpu.matmul %44, %45, %cst_32 {dimension_numbers = #tpu.dot_dimension_numbers<[1], [1], [0], [0], [0, 0, 1, 0], [], []>} : vector<8x8xbf16>, vector<8x8xbf16>, vector<8x8xf32> -> vector<8x8xf32>
    "tpu.trace_stop"() : () -> ()
    %cst_33 = arith.constant dense<0xFF800000> : vector<8xf32>
    %47 = vector.multi_reduction <maximumf>, %46, %cst_33 [1] : vector<8x8xf32> to vector<8xf32>
    %48 = vector.shape_cast %47 : vector<8xf32> to vector<8x1xf32>
    %49 = vector.broadcast %48 : vector<8x1xf32> to vector<8x8xf32>
    %50 = arith.subf %46, %49 : vector<8x8xf32>
    %51 = math.exp %50 : vector<8x8xf32>
    %cst_34 = arith.constant dense<0.000000e+00> : vector<8xf32>
    %52 = vector.multi_reduction <add>, %51, %cst_34 [1] : vector<8x8xf32> to vector<8xf32>
    %53 = vector.shape_cast %52 : vector<8xf32> to vector<8x1xf32>
    %54 = tpu.reciprocal %53 {approx = true} : vector<8x1xf32> -> vector<8x1xf32>
    %55 = vector.broadcast %54 : vector<8x1xf32> to vector<8x8xf32>
    %56 = arith.mulf %51, %55 : vector<8x8xf32>
    %57 = arith.truncf %56 : vector<8x8xf32> to vector<8x8xbf16>
    %58 = vector.extract_strided_slice %13 {offsets = [0, 8], sizes = [8, 8], strides = [1, 1]} : vector<8x32xbf16> to vector<8x8xbf16>
    %cst_35 = arith.constant dense<0.000000e+00> : vector<8x8xf32>
    %59 = tpu.matmul %57, %58, %cst_35 {dimension_numbers = #tpu.dot_dimension_numbers<[1], [0], [0], [1], [0, 0, 1, 1], [], []>} : vector<8x8xbf16>, vector<8x8xbf16>, vector<8x8xf32> -> vector<8x8xf32>
    %c0_36 = arith.constant 0 : index
    %c0_37 = arith.constant 0 : index
    %60 = vector.load %arg17[%c0_36, %c0_37] : memref<8x32xf32, #tpu.memory_space<vmem>>, vector<8x32xf32>
    %61 = arith.truncf %59 : vector<8x8xf32> to vector<8x8xbf16>
    %62 = vector.extract_strided_slice %14 {offsets = [8, 0], sizes = [8, 32], strides = [1, 1]} : vector<32x32xbf16> to vector<8x32xbf16>
    %cst_38 = arith.constant dense<0.000000e+00> : vector<8x32xf32>
    %63 = tpu.matmul %61, %62, %cst_38 {dimension_numbers = #tpu.dot_dimension_numbers<[1], [0], [0], [1], [0, 0, 1, 1], [], []>} : vector<8x8xbf16>, vector<8x32xbf16>, vector<8x32xf32> -> vector<8x32xf32>
    %64 = arith.addf %60, %63 : vector<8x32xf32>
    %c0_39 = arith.constant 0 : index
    %c0_40 = arith.constant 0 : index
    %65 = vector.load %arg17[%c0_39, %c0_40] : memref<8x32xf32, #tpu.memory_space<vmem>>, vector<8x32xf32>
    tpu.vector_store %arg17[%c0_39, %c0_40], %64 {strides = array<i32>} : memref<8x32xf32, #tpu.memory_space<vmem>>, vector<8x32xf32>,
    %c0_41 = arith.constant 0 : index
    %c0_42 = arith.constant 0 : index
    %66 = vector.load %arg18[%c0_41, %c0_42] : memref<8x8xf32, #tpu.memory_space<vmem>>, vector<8x8xf32>
    %67 = arith.addf %66, %56 : vector<8x8xf32>
    %c0_43 = arith.constant 0 : index
    %c0_44 = arith.constant 0 : index
    %68 = vector.load %arg18[%c0_43, %c0_44] : memref<8x8xf32, #tpu.memory_space<vmem>>, vector<8x8xf32>
    tpu.vector_store %arg18[%c0_43, %c0_44], %67 {strides = array<i32>} : memref<8x8xf32, #tpu.memory_space<vmem>>, vector<8x8xf32>,
    %69 = vector.extract_strided_slice %11 {offsets = [0, 16], sizes = [8, 8], strides = [1, 1]} : vector<8x32xbf16> to vector<8x8xbf16>
    %70 = vector.extract_strided_slice %12 {offsets = [0, 16], sizes = [8, 8], strides = [1, 1]} : vector<8x32xbf16> to vector<8x8xbf16>
    "tpu.trace_start"() <{level = 10 : i32, message = "ld,sd->ls"}> : () -> ()
    %cst_45 = arith.constant dense<0.000000e+00> : vector<8x8xf32>
    %71 = tpu.matmul %69, %70, %cst_45 {dimension_numbers = #tpu.dot_dimension_numbers<[1], [1], [0], [0], [0, 0, 1, 0], [], []>} : vector<8x8xbf16>, vector<8x8xbf16>, vector<8x8xf32> -> vector<8x8xf32>
    "tpu.trace_stop"() : () -> ()
    %cst_46 = arith.constant dense<0xFF800000> : vector<8xf32>
    %72 = vector.multi_reduction <maximumf>, %71, %cst_46 [1] : vector<8x8xf32> to vector<8xf32>
    %73 = vector.shape_cast %72 : vector<8xf32> to vector<8x1xf32>
    %74 = vector.broadcast %73 : vector<8x1xf32> to vector<8x8xf32>
    %75 = arith.subf %71, %74 : vector<8x8xf32>
    %76 = math.exp %75 : vector<8x8xf32>
    %cst_47 = arith.constant dense<0.000000e+00> : vector<8xf32>
    %77 = vector.multi_reduction <add>, %76, %cst_47 [1] : vector<8x8xf32> to vector<8xf32>
    %78 = vector.shape_cast %77 : vector<8xf32> to vector<8x1xf32>
    %79 = tpu.reciprocal %78 {approx = true} : vector<8x1xf32> -> vector<8x1xf32>
    %80 = vector.broadcast %79 : vector<8x1xf32> to vector<8x8xf32>
    %81 = arith.mulf %76, %80 : vector<8x8xf32>
    %82 = arith.truncf %81 : vector<8x8xf32> to vector<8x8xbf16>
    %83 = vector.extract_strided_slice %13 {offsets = [0, 16], sizes = [8, 8], strides = [1, 1]} : vector<8x32xbf16> to vector<8x8xbf16>
    %cst_48 = arith.constant dense<0.000000e+00> : vector<8x8xf32>
    %84 = tpu.matmul %82, %83, %cst_48 {dimension_numbers = #tpu.dot_dimension_numbers<[1], [0], [0], [1], [0, 0, 1, 1], [], []>} : vector<8x8xbf16>, vector<8x8xbf16>, vector<8x8xf32> -> vector<8x8xf32>
    %c0_49 = arith.constant 0 : index
    %c0_50 = arith.constant 0 : index
    %85 = vector.load %arg17[%c0_49, %c0_50] : memref<8x32xf32, #tpu.memory_space<vmem>>, vector<8x32xf32>
    %86 = arith.truncf %84 : vector<8x8xf32> to vector<8x8xbf16>
    %87 = vector.extract_strided_slice %14 {offsets = [16, 0], sizes = [8, 32], strides = [1, 1]} : vector<32x32xbf16> to vector<8x32xbf16>
    %cst_51 = arith.constant dense<0.000000e+00> : vector<8x32xf32>
    %88 = tpu.matmul %86, %87, %cst_51 {dimension_numbers = #tpu.dot_dimension_numbers<[1], [0], [0], [1], [0, 0, 1, 1], [], []>} : vector<8x8xbf16>, vector<8x32xbf16>, vector<8x32xf32> -> vector<8x32xf32>
    %89 = arith.addf %85, %88 : vector<8x32xf32>
    %c0_52 = arith.constant 0 : index
    %c0_53 = arith.constant 0 : index
    %90 = vector.load %arg17[%c0_52, %c0_53] : memref<8x32xf32, #tpu.memory_space<vmem>>, vector<8x32xf32>
    tpu.vector_store %arg17[%c0_52, %c0_53], %89 {strides = array<i32>} : memref<8x32xf32, #tpu.memory_space<vmem>>, vector<8x32xf32>,
    %c0_54 = arith.constant 0 : index
    %c0_55 = arith.constant 0 : index
    %91 = vector.load %arg18[%c0_54, %c0_55] : memref<8x8xf32, #tpu.memory_space<vmem>>, vector<8x8xf32>
    %92 = arith.addf %91, %81 : vector<8x8xf32>
    %c0_56 = arith.constant 0 : index
    %c0_57 = arith.constant 0 : index
    %93 = vector.load %arg18[%c0_56, %c0_57] : memref<8x8xf32, #tpu.memory_space<vmem>>, vector<8x8xf32>
    tpu.vector_store %arg18[%c0_56, %c0_57], %92 {strides = array<i32>} : memref<8x8xf32, #tpu.memory_space<vmem>>, vector<8x8xf32>,
    %94 = vector.extract_strided_slice %11 {offsets = [0, 24], sizes = [8, 8], strides = [1, 1]} : vector<8x32xbf16> to vector<8x8xbf16>
    %95 = vector.extract_strided_slice %12 {offsets = [0, 24], sizes = [8, 8], strides = [1, 1]} : vector<8x32xbf16> to vector<8x8xbf16>
    "tpu.trace_start"() <{level = 10 : i32, message = "ld,sd->ls"}> : () -> ()
    %cst_58 = arith.constant dense<0.000000e+00> : vector<8x8xf32>
    %96 = tpu.matmul %94, %95, %cst_58 {dimension_numbers = #tpu.dot_dimension_numbers<[1], [1], [0], [0], [0, 0, 1, 0], [], []>} : vector<8x8xbf16>, vector<8x8xbf16>, vector<8x8xf32> -> vector<8x8xf32>
    "tpu.trace_stop"() : () -> ()
    %cst_59 = arith.constant dense<0xFF800000> : vector<8xf32>
    %97 = vector.multi_reduction <maximumf>, %96, %cst_59 [1] : vector<8x8xf32> to vector<8xf32>
    %98 = vector.shape_cast %97 : vector<8xf32> to vector<8x1xf32>
    %99 = vector.broadcast %98 : vector<8x1xf32> to vector<8x8xf32>
    %100 = arith.subf %96, %99 : vector<8x8xf32>
    %101 = math.exp %100 : vector<8x8xf32>
    %cst_60 = arith.constant dense<0.000000e+00> : vector<8xf32>
    %102 = vector.multi_reduction <add>, %101, %cst_60 [1] : vector<8x8xf32> to vector<8xf32>
    %103 = vector.shape_cast %102 : vector<8xf32> to vector<8x1xf32>
    %104 = tpu.reciprocal %103 {approx = true} : vector<8x1xf32> -> vector<8x1xf32>
    %105 = vector.broadcast %104 : vector<8x1xf32> to vector<8x8xf32>
    %106 = arith.mulf %101, %105 : vector<8x8xf32>
    %107 = arith.truncf %106 : vector<8x8xf32> to vector<8x8xbf16>
    %108 = vector.extract_strided_slice %13 {offsets = [0, 24], sizes = [8, 8], strides = [1, 1]} : vector<8x32xbf16> to vector<8x8xbf16>
    %cst_61 = arith.constant dense<0.000000e+00> : vector<8x8xf32>
    %109 = tpu.matmul %107, %108, %cst_61 {dimension_numbers = #tpu.dot_dimension_numbers<[1], [0], [0], [1], [0, 0, 1, 1], [], []>} : vector<8x8xbf16>, vector<8x8xbf16>, vector<8x8xf32> -> vector<8x8xf32>
    %c0_62 = arith.constant 0 : index
    %c0_63 = arith.constant 0 : index
    %110 = vector.load %arg17[%c0_62, %c0_63] : memref<8x32xf32, #tpu.memory_space<vmem>>, vector<8x32xf32>
    %111 = arith.truncf %109 : vector<8x8xf32> to vector<8x8xbf16>
    %112 = vector.extract_strided_slice %14 {offsets = [24, 0], sizes = [8, 32], strides = [1, 1]} : vector<32x32xbf16> to vector<8x32xbf16>
    %cst_64 = arith.constant dense<0.000000e+00> : vector<8x32xf32>
    %113 = tpu.matmul %111, %112, %cst_64 {dimension_numbers = #tpu.dot_dimension_numbers<[1], [0], [0], [1], [0, 0, 1, 1], [], []>} : vector<8x8xbf16>, vector<8x32xbf16>, vector<8x32xf32> -> vector<8x32xf32>
    %114 = arith.addf %110, %113 : vector<8x32xf32>
    %c0_65 = arith.constant 0 : index
    %c0_66 = arith.constant 0 : index
    %115 = vector.load %arg17[%c0_65, %c0_66] : memref<8x32xf32, #tpu.memory_space<vmem>>, vector<8x32xf32>
    tpu.vector_store %arg17[%c0_65, %c0_66], %114 {strides = array<i32>} : memref<8x32xf32, #tpu.memory_space<vmem>>, vector<8x32xf32>,
    %c0_67 = arith.constant 0 : index
    %c0_68 = arith.constant 0 : index
    %116 = vector.load %arg18[%c0_67, %c0_68] : memref<8x8xf32, #tpu.memory_space<vmem>>, vector<8x8xf32>
    %117 = arith.addf %116, %106 : vector<8x8xf32>
    %c0_69 = arith.constant 0 : index
    %c0_70 = arith.constant 0 : index
    %118 = vector.load %arg18[%c0_69, %c0_70] : memref<8x8xf32, #tpu.memory_space<vmem>>, vector<8x8xf32>
    tpu.vector_store %arg18[%c0_69, %c0_70], %117 {strides = array<i32>} : memref<8x8xf32, #tpu.memory_space<vmem>>, vector<8x8xf32>,
    %c0_71 = arith.constant 0 : index
    %c0_72 = arith.constant 0 : index
    %119 = vector.load %arg17[%c0_71, %c0_72] : memref<8x32xf32, #tpu.memory_space<vmem>>, vector<8x32xf32>
    %c0_73 = arith.constant 0 : index
    %c0_74 = arith.constant 0 : index
    %120 = vector.load %arg12[%c0_73, %c0_74] : memref<1x32xf32, #tpu.memory_space<vmem>>, vector<1x32xf32>
    %121 = vector.broadcast %120 : vector<1x32xf32> to vector<8x32xf32>
    %122 = arith.addf %119, %121 : vector<8x32xf32>
    %c0_75 = arith.constant 0 : index
    %c0_76 = arith.constant 0 : index
    %c0_77 = arith.constant 0 : index
    %123 = vector.load %arg13[%c0_75, %c0_76, %c0_77] : memref<1x8x32xf32, #tpu.memory_space<vmem>>, vector<1x8x32xf32>
    %124 = vector.shape_cast %123 : vector<1x8x32xf32> to vector<8x32xf32>
    %125 = vector.shape_cast %122 : vector<8x32xf32> to vector<1x8x32xf32>
    tpu.vector_store %arg13[%c0_75, %c0_76, %c0_77], %125 {strides = array<i32>} : memref<1x8x32xf32, #tpu.memory_space<vmem>>, vector<1x8x32xf32>,
    %c0_78 = arith.constant 0 : index
    %c0_79 = arith.constant 0 : index
    %126 = vector.load %arg18[%c0_78, %c0_79] : memref<8x8xf32, #tpu.memory_space<vmem>>, vector<8x8xf32>
    %cst_80 = arith.constant 2.500000e-01 : f32
    %127 = vector.broadcast %cst_80 : f32 to vector<8x8xf32>
    %128 = arith.mulf %126, %127 : vector<8x8xf32>
    %c0_81 = arith.constant 0 : index
    %c0_82 = arith.constant 0 : index
    %c0_83 = arith.constant 0 : index
    %129 = vector.load %arg14[%c0_81, %c0_82, %c0_83] : memref<1x8x8xf32, #tpu.memory_space<vmem>>, vector<1x8x8xf32>
    %130 = vector.shape_cast %129 : vector<1x8x8xf32> to vector<8x8xf32>
    %131 = vector.shape_cast %128 : vector<8x8xf32> to vector<1x8x8xf32>
    tpu.vector_store %arg14[%c0_81, %c0_82, %c0_83], %131 {strides = array<i32>} : memref<1x8x8xf32, #tpu.memory_space<vmem>>, vector<1x8x8xf32>,
    return
  }
  func.func @transform_0(%arg0: i32, %arg1: i32) -> (i32, i32, i32) {
    %c0_i32 = arith.constant 0 : i32
    %c0_i32_0 = arith.constant 0 : i32
    return %arg0, %arg1, %c0_i32 : i32, i32, i32
  }
  func.func @transform_1(%arg0: i32, %arg1: i32) -> (i32, i32, i32) {
    %c0_i32 = arith.constant 0 : i32
    %c0_i32_0 = arith.constant 0 : i32
    %c0_i32_1 = arith.constant 0 : i32
    return %arg0, %c0_i32, %c0_i32_0 : i32, i32, i32
  }
  func.func @transform_2(%arg0: i32, %arg1: i32) -> (i32, i32, i32) {
    %c0_i32 = arith.constant 0 : i32
    %c0_i32_0 = arith.constant 0 : i32
    %c0_i32_1 = arith.constant 0 : i32
    return %arg0, %c0_i32, %c0_i32_0 : i32, i32, i32
  }
  func.func @transform_3(%arg0: i32, %arg1: i32) -> (i32, i32) {
    %c0_i32 = arith.constant 0 : i32
    %c0_i32_0 = arith.constant 0 : i32
    %c0_i32_1 = arith.constant 0 : i32
    return %c0_i32, %c0_i32_0 : i32, i32
  }
  func.func @transform_4(%arg0: i32, %arg1: i32) -> (i32, i32) {
    %c0_i32 = arith.constant 0 : i32
    %c0_i32_0 = arith.constant 0 : i32
    %c0_i32_1 = arith.constant 0 : i32
    return %c0_i32, %c0_i32_0 : i32, i32
  }
  func.func @transform_5(%arg0: i32, %arg1: i32) -> (i32, i32) {
    %c0_i32 = arith.constant 0 : i32
    %c0_i32_0 = arith.constant 0 : i32
    %c0_i32_1 = arith.constant 0 : i32
    return %c0_i32, %c0_i32_0 : i32, i32
  }
  func.func @transform_6(%arg0: i32, %arg1: i32) -> (i32, i32) {
    %c0_i32 = arith.constant 0 : i32
    %c0_i32_0 = arith.constant 0 : i32
    %c0_i32_1 = arith.constant 0 : i32
    return %c0_i32, %c0_i32_0 : i32, i32
  }
  func.func @transform_7(%arg0: i32, %arg1: i32) -> (i32, i32) {
    %c0_i32 = arith.constant 0 : i32
    %c0_i32_0 = arith.constant 0 : i32
    %c0_i32_1 = arith.constant 0 : i32
    return %c0_i32, %c0_i32_0 : i32, i32
  }
  func.func @transform_8(%arg0: i32, %arg1: i32) -> (i32, i32) {
    %c0_i32 = arith.constant 0 : i32
    %c0_i32_0 = arith.constant 0 : i32
    %c0_i32_1 = arith.constant 0 : i32
    return %c0_i32, %c0_i32_0 : i32, i32
  }
  func.func @transform_9(%arg0: i32, %arg1: i32) -> (i32, i32) {
    %c0_i32 = arith.constant 0 : i32
    %c0_i32_0 = arith.constant 0 : i32
    %c0_i32_1 = arith.constant 0 : i32
    return %c0_i32, %c0_i32_0 : i32, i32
  }
  func.func @transform_10(%arg0: i32, %arg1: i32) -> (i32, i32) {
    %c0_i32 = arith.constant 0 : i32
    %c0_i32_0 = arith.constant 0 : i32
    %c0_i32_1 = arith.constant 0 : i32
    return %c0_i32, %c0_i32_0 : i32, i32
  }
  func.func @transform_11(%arg0: i32, %arg1: i32) -> (i32, i32, i32) {
    %c0_i32 = arith.constant 0 : i32
    %c0_i32_0 = arith.constant 0 : i32
    return %arg0, %arg1, %c0_i32 : i32, i32, i32
  }
  func.func @transform_12(%arg0: i32, %arg1: i32) -> (i32, i32, i32) {
    %c0_i32 = arith.constant 0 : i32
    %c0_i32_0 = arith.constant 0 : i32
    return %arg0, %arg1, %c0_i32 : i32, i32, i32
  }
}

</mosaic_0001>

<llo_original>
// kernel: tpu_custom_call.1
$region0: #{tpu_custom_call.1}
  #allocation0 [shape = 'u32[]', space=smem, size = 0x4, offset = 0x4, fixed_abs, tag = 'smem constant byte address 0x4 - core index']
  #allocation1 [shape = 'u32[72,128]{1,0:T(1,128)}', space=vmem, size = 0x9000, scoped, tag = 'internal scratch']
  #allocation2 [shape = 'bf16[8,32]{1,0:T(8,128)(2,1)}', space=vmem, size = 0x800, scoped, tag = 'scratch operand']
  #allocation3 [shape = 'bf16[8,32]{1,0:T(8,128)(2,1)}', space=vmem, size = 0x800, scoped, tag = 'scratch operand']
  #allocation4 [shape = 'f32[8,32]{1,0:T(8,128)}', space=vmem, size = 0x1000, scoped, tag = 'scratch operand']
  #allocation5 [shape = 'f32[8,8]{1,0:T(8,128)}', space=vmem, size = 0x1000, scoped, tag = 'scratch operand']
  %s0 = inlined_call_operand.hbm [shape: f32[2,8,32], index: 0, kind: input, shape index: {}]
  %s1 = inlined_call_operand.hbm [shape: f32[2,8,32], index: 1, kind: input, shape index: {}]
  %s2 = inlined_call_operand.hbm [shape: f32[2,8,32], index: 2, kind: input, shape index: {}]
  %s3 = inlined_call_operand.hbm [shape: bf16[32,32], index: 3, kind: input, shape index: {}]
  %s4 = inlined_call_operand.hbm [shape: bf16[32,32], index: 4, kind: input, shape index: {}]
  %s5 = inlined_call_operand.hbm [shape: bf16[32,32], index: 5, kind: input, shape index: {}]
  %s6 = inlined_call_operand.hbm [shape: bf16[32,32], index: 6, kind: input, shape index: {}]
  %s7 = inlined_call_operand.vmem [shape: f32[1,32], index: 7, kind: input, shape index: {}]
  %s8 = inlined_call_operand.vmem [shape: f32[1,32], index: 8, kind: input, shape index: {}]
  %s9 = inlined_call_operand.vmem [shape: f32[1,32], index: 9, kind: input, shape index: {}]
  %s10 = inlined_call_operand.vmem [shape: f32[1,32], index: 10, kind: input, shape index: {}]
  %s11 = inlined_call_operand.hbm [shape: f32[2,8,32], index: 11, kind: output, shape index: {0}]
  %s12 = inlined_call_operand.hbm [shape: f32[2,8,8], index: 12, kind: output, shape index: {1}]
  %13 = xla_tuple %s11, %s12
  %s14 = sld [smem:[#allocation0]]
  $region117: #{tpu_custom_call.1} parent=0
    _
  %s16 = ssub.s32 1, %s14
  %s17 = scalar_select 0, %s16, %s14
  $region1: #{tpu_custom_call.1} parent=0
    #allocation6 [shape = 'u8[8192]{0}', space=vmem, size = 0x2000, scoped, tag = 'input window, operand 0']
    #allocation7 [shape = 's32[2]{0}', space=sflag, size = 0x8, scoped, tag = 'scoped memory for tpu_custom_call.1']
    #allocation8 [shape = 's32[2]{0}', space=sflag, size = 0x8, scoped, tag = 'scoped memory for tpu_custom_call.1']
    #allocation9 [shape = 'u8[8192]{0}', space=vmem, size = 0x2000, scoped, tag = 'input window, operand 1']
    #allocation10 [shape = 's32[2]{0}', space=sflag, size = 0x8, scoped, tag = 'scoped memory for tpu_custom_call.1']
    #allocation11 [shape = 'u8[8192]{0}', space=vmem, size = 0x2000, scoped, tag = 'input window, operand 2']
    #allocation12 [shape = 'u8[8192]{0}', space=vmem, size = 0x2000, scoped, tag = 'input window, operand 3, single buffered']
    #allocation13 [shape = 's32[1]{0}', space=sflag, size = 0x4, scoped, tag = 'scoped memory for tpu_custom_call.1']
    #allocation14 [shape = 'u8[8192]{0}', space=vmem, size = 0x2000, scoped, tag = 'input window, operand 4, single buffered']
    #allocation15 [shape = 'u8[8192]{0}', space=vmem, size = 0x2000, scoped, tag = 'input window, operand 5, single buffered']
    #allocation16 [shape = 's32[1]{0}', space=sflag, size = 0x4, scoped, tag = 'scoped memory for tpu_custom_call.1']
    #allocation17 [shape = 'u8[8192]{0}', space=vmem, size = 0x2000, scoped, tag = 'input window, operand 6, single buffered']
    #allocation18 [shape = 'u8[8192]{0}', space=vmem, size = 0x2000, scoped, tag = 'output window, operand 0']
    #allocation19 [shape = 'u8[8192]{0}', space=vmem, size = 0x2000, scoped, tag = 'output window, operand 1']
    #allocation20 [shape = 's32[2]{0}', space=sflag, size = 0x8, scoped, tag = 'scoped memory for tpu_custom_call.1']
    %18 = vsyncpa [#allocation7], 0
    %s19 = scalar_lea.sflag [#allocation7], 1
    %20 = vsyncpa %s19, 0
    %21 = vsyncpa [#allocation10], 0
    %s22 = scalar_lea.sflag [#allocation10], 1
    %23 = vsyncpa %s22, 0
    %24 = vsyncpa [#allocation13], 0
    %25 = vsyncpa [#allocation16], 0
    %26 = vsyncpa [#allocation8], 0
    %s27 = scalar_lea.sflag [#allocation8], 1
    %28 = vsyncpa %s27, 0
    %29 = vsyncpa [#allocation20], 0
    %s30 = scalar_lea.sflag [#allocation20], 1
    %31 = vsyncpa %s30, 0
    loop: start=0, step=1, limit=4
    $region2: #{tpu_custom_call.1} parent=1 // loop_pre_header
      _
    $region3: #{tpu_custom_call.1} parent=1 // loop_header
      %s33 = sphi 0, %s37
      %p34 = scmp.ge.s32.totalorder %s33, 4
      %s40 = sphi 0, %s52
      %s41 = sphi 0, %s48
      %s42 = sphi 0, %s40
      %s43 = sphi 0, %s41
      %s44 = sphi 0, %s42
      %s45 = sphi 0, %s43
      %s57 = sphi 0, %s59
      %s60 = sphi 0, %s57
      %s61 = sphi 0, %s60
      %s77 = sphi 0, %s61
      %s83 = sphi 0, %s85
      %s86 = sphi 0, %s83
      %s87 = sphi 0, %s86
      %s103 = sphi 0, %s87
      %s109 = sphi 0, %s111
      %s112 = sphi 0, %s109
      %s113 = sphi 0, %s112
      %s129 = sphi 0, %s113
      %s133 = sphi 0, %s133
      %s135 = sphi 0, %s133
      %s136 = sphi 0, %s135
      %s150 = sphi 0, %s136
      %s154 = sphi 0, %s154
      %s156 = sphi 0, %s154
      %s157 = sphi 0, %s156
      %s171 = sphi 0, %s157
      %s175 = sphi 0, %s175
      %s177 = sphi 0, %s175
      %s178 = sphi 0, %s177
      %s192 = sphi 0, %s178
      %s196 = sphi 0, %s196
      %s198 = sphi 0, %s196
      %s199 = sphi 0, %s198
      %s213 = sphi 0, %s199
      %s217 = sphi 0, %s217
      %s219 = sphi 0, %s217
      %s220 = sphi 0, %s219
      %s234 = sphi 0, %s220
      %s238 = sphi 0, %s238
      %s240 = sphi 0, %s238
      %s241 = sphi 0, %s240
      %s255 = sphi 0, %s241
      %s259 = sphi 0, %s259
      %s261 = sphi 0, %s259
      %s262 = sphi 0, %s261
      %s276 = sphi 0, %s262
      %s280 = sphi 0, %s280
      %s282 = sphi 0, %s280
      %s283 = sphi 0, %s282
      %s297 = sphi 0, %s283
      %s305 = sphi 0, %s307
      %s308 = sphi 0, %s305
      %s309 = sphi 0, %s308
      %s325 = sphi 0, %s309
      %s333 = sphi 0, %s335
      %s336 = sphi 0, %s333
      %s337 = sphi 0, %s336
      %s353 = sphi 0, %s337
    $region4: #{tpu_custom_call.1} parent=1 // loop_header_branch
      %36 = sbr.rel (%p34) target = $region8
    $region5: #{tpu_custom_call.1} parent=1 // loop_body
      %s38 = ssub.s32 %s33, 1
      %s39 = ssub.s32 %s33, 2
      %s46 = sadd.s32 1, %s41
      %p47 = scmp.ge.s32.totalorder %s46, 1
      %s48 = scalar_select %p47, 0, %s46
      %s49 = sadd.s32 1, %s40
      %s50 = scalar_select %p47, %s49, %s40
      %p51 = scmp.ge.s32.totalorder %s50, 2
      %s52 = scalar_select %p51, 0, %s50
      %s53 = ssub.s32 %s40, %s52
      %s54 = ssub.s32 %s41, %s48
      %s55 = sor.u32 %s53, %s54
      %p56 = scmp.eq.s32.totalorder %s55, 0
      %s58 = sadd.s32 %s57, 1
      %s59 = scalar_select %p56, %s57, %s58
      %p62 = pneg %p56
      %p63 = scmp.eq.s32.totalorder %s33, 1
      %p64 = por %p62, %p63
      %p65 = scmp.ne.s32.totalorder %s57, %s60
      %p66 = scmp.eq.s32.totalorder %s33, 0
      %p67 = por %p65, %p66
      %p68 = scmp.ne.s32.totalorder %s57, %s60
      %p69 = scmp.eq.s32.totalorder %s38, 1
      %p70 = por %p68, %p69
      %p71 = scmp.ne.s32.totalorder %s60, %s61
      %p72 = scmp.eq.s32.totalorder %s38, 0
      %p73 = por %p71, %p72
      %p74 = scmp.ne.s32.totalorder %s60, %s61
      %p75 = scmp.eq.s32.totalorder %s39, 1
      %p76 = por %p74, %p75
      %p78 = scmp.ne.s32.totalorder %s61, %s77
      %p79 = scmp.eq.s32.totalorder %s39, 0
      %p80 = por %p78, %p79
      %s81 = ssub.s32 %s40, %s52
      %p82 = scmp.eq.s32.totalorder %s81, 0
      %s84 = sadd.s32 %s83, 1
      %s85 = scalar_select %p82, %s83, %s84
      %p88 = pneg %p82
      %p89 = scmp.eq.s32.totalorder %s33, 1
      %p90 = por %p88, %p89
      %p91 = scmp.ne.s32.totalorder %s83, %s86
      %p92 = scmp.eq.s32.totalorder %s33, 0
      %p93 = por %p91, %p92
      %p94 = scmp.ne.s32.totalorder %s83, %s86
      %p95 = scmp.eq.s32.totalorder %s38, 1
      %p96 = por %p94, %p95
      %p97 = scmp.ne.s32.totalorder %s86, %s87
      %p98 = scmp.eq.s32.totalorder %s38, 0
      %p99 = por %p97, %p98
      %p100 = scmp.ne.s32.totalorder %s86, %s87
      %p101 = scmp.eq.s32.totalorder %s39, 1
      %p102 = por %p100, %p101
      %p104 = scmp.ne.s32.totalorder %s87, %s103
      %p105 = scmp.eq.s32.totalorder %s39, 0
      %p106 = por %p104, %p105
      %s107 = ssub.s32 %s40, %s52
      %p108 = scmp.eq.s32.totalorder %s107, 0
      %s110 = sadd.s32 %s109, 1
      %s111 = scalar_select %p108, %s109, %s110
      %p114 = pneg %p108
      %p115 = scmp.eq.s32.totalorder %s33, 1
      %p116 = por %p114, %p115
      %p117 = scmp.ne.s32.totalorder %s109, %s112
      %p118 = scmp.eq.s32.totalorder %s33, 0
      %p119 = por %p117, %p118
      %p120 = scmp.ne.s32.totalorder %s109, %s112
      %p121 = scmp.eq.s32.totalorder %s38, 1
      %p122 = por %p120, %p121
      %p123 = scmp.ne.s32.totalorder %s112, %s113
      %p124 = scmp.eq.s32.totalorder %s38, 0
      %p125 = por %p123, %p124
      %p126 = scmp.ne.s32.totalorder %s112, %s113
      %p127 = scmp.eq.s32.totalorder %s39, 1
      %p128 = por %p126, %p127
      %p130 = scmp.ne.s32.totalorder %s113, %s129
      %p131 = scmp.eq.s32.totalorder %s39, 0
      %p132 = por %p130, %p131
      %s134 = sadd.s32 %s133, 1
      %p137 = scmp.eq.s32.totalorder %s33, 1
      %p138 = scmp.ne.s32.totalorder %s133, %s135
      %p139 = scmp.eq.s32.totalorder %s33, 0
      %p140 = por %p138, %p139
      %p141 = scmp.ne.s32.totalorder %s133, %s135
      %p142 = scmp.eq.s32.totalorder %s38, 1
      %p143 = por %p141, %p142
      %p144 = scmp.ne.s32.totalorder %s135, %s136
      %p145 = scmp.eq.s32.totalorder %s38, 0
      %p146 = por %p144, %p145
      %p147 = scmp.ne.s32.totalorder %s135, %s136
      %p148 = scmp.eq.s32.totalorder %s39, 1
      %p149 = por %p147, %p148
      %p151 = scmp.ne.s32.totalorder %s136, %s150
      %p152 = scmp.eq.s32.totalorder %s39, 0
      %p153 = por %p151, %p152
      %s155 = sadd.s32 %s154, 1
      %p158 = scmp.eq.s32.totalorder %s33, 1
      %p159 = scmp.ne.s32.totalorder %s154, %s156
      %p160 = scmp.eq.s32.totalorder %s33, 0
      %p161 = por %p159, %p160
      %p162 = scmp.ne.s32.totalorder %s154, %s156
      %p163 = scmp.eq.s32.totalorder %s38, 1
      %p164 = por %p162, %p163
      %p165 = scmp.ne.s32.totalorder %s156, %s157
      %p166 = scmp.eq.s32.totalorder %s38, 0
      %p167 = por %p165, %p166
      %p168 = scmp.ne.s32.totalorder %s156, %s157
      %p169 = scmp.eq.s32.totalorder %s39, 1
      %p170 = por %p168, %p169
      %p172 = scmp.ne.s32.totalorder %s157, %s171
      %p173 = scmp.eq.s32.totalorder %s39, 0
      %p174 = por %p172, %p173
      %s176 = sadd.s32 %s175, 1
      %p179 = scmp.eq.s32.totalorder %s33, 1
      %p180 = scmp.ne.s32.totalorder %s175, %s177
      %p181 = scmp.eq.s32.totalorder %s33, 0
      %p182 = por %p180, %p181
      %p183 = scmp.ne.s32.totalorder %s175, %s177
      %p184 = scmp.eq.s32.totalorder %s38, 1
      %p185 = por %p183, %p184
      %p186 = scmp.ne.s32.totalorder %s177, %s178
      %p187 = scmp.eq.s32.totalorder %s38, 0
      %p188 = por %p186, %p187
      %p189 = scmp.ne.s32.totalorder %s177, %s178
      %p190 = scmp.eq.s32.totalorder %s39, 1
      %p191 = por %p189, %p190
      %p193 = scmp.ne.s32.totalorder %s178, %s192
      %p194 = scmp.eq.s32.totalorder %s39, 0
      %p195 = por %p193, %p194
      %s197 = sadd.s32 %s196, 1
      %p200 = scmp.eq.s32.totalorder %s33, 1
      %p201 = scmp.ne.s32.totalorder %s196, %s198
      %p202 = scmp.eq.s32.totalorder %s33, 0
      %p203 = por %p201, %p202
      %p204 = scmp.ne.s32.totalorder %s196, %s198
      %p205 = scmp.eq.s32.totalorder %s38, 1
      %p206 = por %p204, %p205
      %p207 = scmp.ne.s32.totalorder %s198, %s199
      %p208 = scmp.eq.s32.totalorder %s38, 0
      %p209 = por %p207, %p208
      %p210 = scmp.ne.s32.totalorder %s198, %s199
      %p211 = scmp.eq.s32.totalorder %s39, 1
      %p212 = por %p210, %p211
      %p214 = scmp.ne.s32.totalorder %s199, %s213
      %p215 = scmp.eq.s32.totalorder %s39, 0
      %p216 = por %p214, %p215
      %s218 = sadd.s32 %s217, 1
      %p221 = scmp.eq.s32.totalorder %s33, 1
      %p222 = scmp.ne.s32.totalorder %s217, %s219
      %p223 = scmp.eq.s32.totalorder %s33, 0
      %p224 = por %p222, %p223
      %p225 = scmp.ne.s32.totalorder %s217, %s219
      %p226 = scmp.eq.s32.totalorder %s38, 1
      %p227 = por %p225, %p226
      %p228 = scmp.ne.s32.totalorder %s219, %s220
      %p229 = scmp.eq.s32.totalorder %s38, 0
      %p230 = por %p228, %p229
      %p231 = scmp.ne.s32.totalorder %s219, %s220
      %p232 = scmp.eq.s32.totalorder %s39, 1
      %p233 = por %p231, %p232
      %p235 = scmp.ne.s32.totalorder %s220, %s234
      %p236 = scmp.eq.s32.totalorder %s39, 0
      %p237 = por %p235, %p236
      %s239 = sadd.s32 %s238, 1
      %p242 = scmp.eq.s32.totalorder %s33, 1
      %p243 = scmp.ne.s32.totalorder %s238, %s240
      %p244 = scmp.eq.s32.totalorder %s33, 0
      %p245 = por %p243, %p244
      %p246 = scmp.ne.s32.totalorder %s238, %s240
      %p247 = scmp.eq.s32.totalorder %s38, 1
      %p248 = por %p246, %p247
      %p249 = scmp.ne.s32.totalorder %s240, %s241
      %p250 = scmp.eq.s32.totalorder %s38, 0
      %p251 = por %p249, %p250
      %p252 = scmp.ne.s32.totalorder %s240, %s241
      %p253 = scmp.eq.s32.totalorder %s39, 1
      %p254 = por %p252, %p253
      %p256 = scmp.ne.s32.totalorder %s241, %s255
      %p257 = scmp.eq.s32.totalorder %s39, 0
      %p258 = por %p256, %p257
      %s260 = sadd.s32 %s259, 1
      %p263 = scmp.eq.s32.totalorder %s33, 1
      %p264 = scmp.ne.s32.totalorder %s259, %s261
      %p265 = scmp.eq.s32.totalorder %s33, 0
      %p266 = por %p264, %p265
      %p267 = scmp.ne.s32.totalorder %s259, %s261
      %p268 = scmp.eq.s32.totalorder %s38, 1
      %p269 = por %p267, %p268
      %p270 = scmp.ne.s32.totalorder %s261, %s262
      %p271 = scmp.eq.s32.totalorder %s38, 0
      %p272 = por %p270, %p271
      %p273 = scmp.ne.s32.totalorder %s261, %s262
      %p274 = scmp.eq.s32.totalorder %s39, 1
      %p275 = por %p273, %p274
      %p277 = scmp.ne.s32.totalorder %s262, %s276
      %p278 = scmp.eq.s32.totalorder %s39, 0
      %p279 = por %p277, %p278
      %s281 = sadd.s32 %s280, 1
      %p284 = scmp.eq.s32.totalorder %s33, 1
      %p285 = scmp.ne.s32.totalorder %s280, %s282
      %p286 = scmp.eq.s32.totalorder %s33, 0
      %p287 = por %p285, %p286
      %p288 = scmp.ne.s32.totalorder %s280, %s282
      %p289 = scmp.eq.s32.totalorder %s38, 1
      %p290 = por %p288, %p289
      %p291 = scmp.ne.s32.totalorder %s282, %s283
      %p292 = scmp.eq.s32.totalorder %s38, 0
      %p293 = por %p291, %p292
      %p294 = scmp.ne.s32.totalorder %s282, %s283
      %p295 = scmp.eq.s32.totalorder %s39, 1
      %p296 = por %p294, %p295
      %p298 = scmp.ne.s32.totalorder %s283, %s297
      %p299 = scmp.eq.s32.totalorder %s39, 0
      %p300 = por %p298, %p299
      %s301 = ssub.s32 %s40, %s52
      %s302 = ssub.s32 %s41, %s48
      %s303 = sor.u32 %s301, %s302
      %p304 = scmp.eq.s32.totalorder %s303, 0
      %s306 = sadd.s32 %s305, 1
      %s307 = scalar_select %p304, %s305, %s306
      %p310 = pneg %p304
      %p311 = scmp.eq.s32.totalorder %s33, 1
      %p312 = por %p310, %p311
      %p313 = scmp.ne.s32.totalorder %s305, %s308
      %p314 = scmp.eq.s32.totalorder %s33, 0
      %p315 = por %p313, %p314
      %p316 = scmp.ne.s32.totalorder %s305, %s308
      %p317 = scmp.eq.s32.totalorder %s38, 1
      %p318 = por %p316, %p317
      %p319 = scmp.ne.s32.totalorder %s308, %s309
      %p320 = scmp.eq.s32.totalorder %s38, 0
      %p321 = por %p319, %p320
      %p322 = scmp.ne.s32.totalorder %s308, %s309
      %p323 = scmp.eq.s32.totalorder %s39, 1
      %p324 = por %p322, %p323
      %p326 = scmp.ne.s32.totalorder %s309, %s325
      %p327 = scmp.eq.s32.totalorder %s39, 0
      %p328 = por %p326, %p327
      %s329 = ssub.s32 %s40, %s52
      %s330 = ssub.s32 %s41, %s48
      %s331 = sor.u32 %s329, %s330
      %p332 = scmp.eq.s32.totalorder %s331, 0
      %s334 = sadd.s32 %s333, 1
      %s335 = scalar_select %p332, %s333, %s334
      %p338 = pneg %p332
      %p339 = scmp.eq.s32.totalorder %s33, 1
      %p340 = por %p338, %p339
      %p341 = scmp.ne.s32.totalorder %s333, %s336
      %p342 = scmp.eq.s32.totalorder %s33, 0
      %p343 = por %p341, %p342
      %p344 = scmp.ne.s32.totalorder %s333, %s336
      %p345 = scmp.eq.s32.totalorder %s38, 1
      %p346 = por %p344, %p345
      %p347 = scmp.ne.s32.totalorder %s336, %s337
      %p348 = scmp.eq.s32.totalorder %s38, 0
      %p349 = por %p347, %p348
      %p350 = scmp.ne.s32.totalorder %s336, %s337
      %p351 = scmp.eq.s32.totalorder %s39, 1
      %p352 = por %p350, %p351
      %p354 = scmp.ne.s32.totalorder %s337, %s353
      %p355 = scmp.eq.s32.totalorder %s39, 0
      %p356 = por %p354, %p355
      %p357 = scmp.le.s32.totalorder 1, %s33
      %p358 = scmp.lt.s32.totalorder %s33, 3
      %p359 = pnand %p357, %p358
      %p360 = pneg %p359
      // Predicated region
      $region9: #{tpu_custom_call.1} parent=5 // pred_check
        _
      $region10: #{tpu_custom_call.1} parent=5 // pred_check_branch
        %362 = sbr.rel (%p359) target = $region12
      $region11: #{tpu_custom_call.1} parent=5 // pred_region
        %s363 = ssub.s32 %s33, 1
        // Predicated region
        $region13: #{tpu_custom_call.1} parent=11 // pred_check
          %p364 = pneg %p146
        $region14: #{tpu_custom_call.1} parent=11 // pred_check_branch
          %366 = sbr.rel (%p364) target = $region16
        $region15: #{tpu_custom_call.1} parent=11 // pred_region
          %368 = vsyncadd [#allocation13], 0
          %s369 = sshll.u32 %s3, 4
          %s370 = int_to_ptr.hbm [resolvable:$true] %s369
          %s371 = sshll.u32 [#allocation12], 4
          %s372 = int_to_ptr.vmem [resolvable:$true] %s371
          %377 = dma.hbm_to_vmem [thread:$0]  %s370, 256, %s372, [#allocation13], 64, 64, 4
        $region16: #{tpu_custom_call.1} parent=11 // pred_fallthru
          _
        // Predicated region
        $region17: #{tpu_custom_call.1} parent=11 // pred_check
          %p378 = pneg %p167
        $region18: #{tpu_custom_call.1} parent=11 // pred_check_branch
          %380 = sbr.rel (%p378) target = $region20
        $region19: #{tpu_custom_call.1} parent=11 // pred_region
          %382 = vsyncadd [#allocation13], 0
          %s383 = sshll.u32 %s4, 4
          %s384 = int_to_ptr.hbm [resolvable:$true] %s383
          %s385 = sshll.u32 [#allocation14], 4
          %s386 = int_to_ptr.vmem [resolvable:$true] %s385
          %391 = dma.hbm_to_vmem [thread:$0]  %s384, 256, %s386, [#allocation13], 64, 64, 4
        $region20: #{tpu_custom_call.1} parent=11 // pred_fallthru
          _
        // Predicated region
        $region21: #{tpu_custom_call.1} parent=11 // pred_check
          %p392 = pneg %p188
        $region22: #{tpu_custom_call.1} parent=11 // pred_check_branch
          %394 = sbr.rel (%p392) target = $region24
        $region23: #{tpu_custom_call.1} parent=11 // pred_region
          %396 = vsyncadd [#allocation16], 0
          %s397 = sshll.u32 %s5, 4
          %s398 = int_to_ptr.hbm [resolvable:$true] %s397
          %s399 = sshll.u32 [#allocation15], 4
          %s400 = int_to_ptr.vmem [resolvable:$true] %s399
          %405 = dma.hbm_to_vmem [thread:$0]  %s398, 256, %s400, [#allocation16], 64, 64, 4
        $region24: #{tpu_custom_call.1} parent=11 // pred_fallthru
          _
        // Predicated region
        $region25: #{tpu_custom_call.1} parent=11 // pred_check
          %p406 = pneg %p209
        $region26: #{tpu_custom_call.1} parent=11 // pred_check_branch
          %408 = sbr.rel (%p406) target = $region28
        $region27: #{tpu_custom_call.1} parent=11 // pred_region
          %410 = vsyncadd [#allocation16], 0
          %s411 = sshll.u32 %s6, 4
          %s412 = int_to_ptr.hbm [resolvable:$true] %s411
          %s413 = sshll.u32 [#allocation17], 4
          %s414 = int_to_ptr.vmem [resolvable:$true] %s413
          %419 = dma.hbm_to_vmem [thread:$0]  %s412, 256, %s414, [#allocation16], 64, 64, 4
        $region28: #{tpu_custom_call.1} parent=11 // pred_fallthru
          _
        // Predicated region
        $region29: #{tpu_custom_call.1} parent=11 // pred_check
          %p420 = pneg %p230
        $region30: #{tpu_custom_call.1} parent=11 // pred_check_branch
          %422 = sbr.rel (%p420) target = $region32
        $region31: #{tpu_custom_call.1} parent=11 // pred_region
          _
        $region32: #{tpu_custom_call.1} parent=11 // pred_fallthru
          _
        // Predicated region
        $region33: #{tpu_custom_call.1} parent=11 // pred_check
          %p423 = pneg %p251
        $region34: #{tpu_custom_call.1} parent=11 // pred_check_branch
          %425 = sbr.rel (%p423) target = $region36
        $region35: #{tpu_custom_call.1} parent=11 // pred_region
          _
        $region36: #{tpu_custom_call.1} parent=11 // pred_fallthru
          _
        // Predicated region
        $region37: #{tpu_custom_call.1} parent=11 // pred_check
          %p426 = pneg %p272
        $region38: #{tpu_custom_call.1} parent=11 // pred_check_branch
          %428 = sbr.rel (%p426) target = $region40
        $region39: #{tpu_custom_call.1} parent=11 // pred_region
          _
        $region40: #{tpu_custom_call.1} parent=11 // pred_fallthru
          _
        // Predicated region
        $region41: #{tpu_custom_call.1} parent=11 // pred_check
          %p429 = pneg %p293
        $region42: #{tpu_custom_call.1} parent=11 // pred_check_branch
          %431 = sbr.rel (%p429) target = $region44
        $region43: #{tpu_custom_call.1} parent=11 // pred_region
          _
        $region44: #{tpu_custom_call.1} parent=11 // pred_fallthru
          _
      $region12: #{tpu_custom_call.1} parent=5 // pred_fallthru
        _
      %p432 = scmp.lt.s32.totalorder %s33, 2
      // Predicated region
      $region45: #{tpu_custom_call.1} parent=5 // pred_check
        %p433 = pneg %p432
      $region46: #{tpu_custom_call.1} parent=5 // pred_check_branch
        %435 = sbr.rel (%p433) target = $region48
      $region47: #{tpu_custom_call.1} parent=5 // pred_region
        // Predicated region
        $region49: #{tpu_custom_call.1} parent=47 // pred_check
          %p436 = pneg %p67
        $region50: #{tpu_custom_call.1} parent=47 // pred_check_branch
          %438 = sbr.rel (%p436) target = $region52
        $region51: #{tpu_custom_call.1} parent=47 // pred_region
          %s439 = sand.u32 %s57, 1
          %s440 = scalar_lea.sflag [#allocation7], %s439
          %s441 = sand.u32 %s57, 1
          %s442 = smul.addr %s441, 8
          %s443 = scalar_lea.vmem [#allocation6], %s442
          %445 = vsyncadd %s440, 0
          %s446 = sadd.s32 %s41, %s40
          %s447 = smul.addr %s446, 8
          %s448 = scalar_lea.hbm %s0, %s447
          %s450 = sshll.u32 %s448, 4
          %s451 = int_to_ptr.hbm [resolvable:$true] %s450
          %s452 = sshll.u32 %s443, 4
          %s453 = int_to_ptr.vmem [resolvable:$true] %s452
          %455 = dma.hbm_to_vmem [thread:$0]  %s451, 128, %s453, %s440
        $region52: #{tpu_custom_call.1} parent=47 // pred_fallthru
          _
        // Predicated region
        $region53: #{tpu_custom_call.1} parent=47 // pred_check
          %p456 = pneg %p93
        $region54: #{tpu_custom_call.1} parent=47 // pred_check_branch
          %458 = sbr.rel (%p456) target = $region56
        $region55: #{tpu_custom_call.1} parent=47 // pred_region
          %s459 = sand.u32 %s33, 1
          %s460 = scalar_lea.sflag [#allocation10], %s459
          %s461 = sand.u32 %s83, 1
          %s462 = smul.addr %s461, 8
          %s463 = scalar_lea.vmem [#allocation9], %s462
          %465 = vsyncadd %s460, 0
          %s466 = smul.addr %s40, 8
          %s467 = scalar_lea.hbm %s1, %s466
          %s469 = sshll.u32 %s467, 4
          %s470 = int_to_ptr.hbm [resolvable:$true] %s469
          %s471 = sshll.u32 %s463, 4
          %s472 = int_to_ptr.vmem [resolvable:$true] %s471
          %474 = dma.hbm_to_vmem [thread:$0]  %s470, 128, %s472, %s460
        $region56: #{tpu_custom_call.1} parent=47 // pred_fallthru
          _
        // Predicated region
        $region57: #{tpu_custom_call.1} parent=47 // pred_check
          %p475 = pneg %p119
        $region58: #{tpu_custom_call.1} parent=47 // pred_check_branch
          %477 = sbr.rel (%p475) target = $region60
        $region59: #{tpu_custom_call.1} parent=47 // pred_region
          %s478 = sand.u32 %s33, 1
          %s479 = scalar_lea.sflag [#allocation10], %s478
          %s480 = sand.u32 %s109, 1
          %s481 = smul.addr %s480, 8
          %s482 = scalar_lea.vmem [#allocation11], %s481
          %484 = vsyncadd %s479, 0
          %s485 = smul.addr %s40, 8
          %s486 = scalar_lea.hbm %s2, %s485
          %s488 = sshll.u32 %s486, 4
          %s489 = int_to_ptr.hbm [resolvable:$true] %s488
          %s490 = sshll.u32 %s482, 4
          %s491 = int_to_ptr.vmem [resolvable:$true] %s490
          %493 = dma.hbm_to_vmem [thread:$0]  %s489, 128, %s491, %s479
        $region60: #{tpu_custom_call.1} parent=47 // pred_fallthru
          _
      $region48: #{tpu_custom_call.1} parent=5 // pred_fallthru
        _
      %p494 = scmp.le.s32.totalorder 1, %s33
      %p495 = scmp.lt.s32.totalorder %s33, 3
      %p496 = pnand %p494, %p495
      %p497 = pneg %p496
      // Predicated region
      $region61: #{tpu_custom_call.1} parent=5 // pred_check
        _
      $region62: #{tpu_custom_call.1} parent=5 // pred_check_branch
        %499 = sbr.rel (%p496) target = $region64
      $region63: #{tpu_custom_call.1} parent=5 // pred_region
        %s500 = ssub.s32 %s33, 1
        %s501 = sand.u32 %s60, 1
        %s502 = scalar_lea.sflag [#allocation7], %s501
        %s503 = sand.u32 %s60, 1
        %s504 = smul.addr %s503, 8
        %s505 = scalar_lea.vmem [#allocation6], %s504
        // Predicated region
        $region65: #{tpu_custom_call.1} parent=63 // pred_check
          %p506 = pneg %p73
        $region66: #{tpu_custom_call.1} parent=63 // pred_check_branch
          %508 = sbr.rel (%p506) target = $region68
        $region67: #{tpu_custom_call.1} parent=63 // pred_region
          %510 = dma.done %s502, 128
        $region68: #{tpu_custom_call.1} parent=63 // pred_fallthru
          _
        %s511 = sand.u32 %s38, 1
        %s512 = scalar_lea.sflag [#allocation10], %s511
        %s513 = sand.u32 %s86, 1
        %s514 = smul.addr %s513, 8
        %s515 = scalar_lea.vmem [#allocation9], %s514
        // Predicated region
        $region69: #{tpu_custom_call.1} parent=63 // pred_check
          %p516 = pneg %p99
        $region70: #{tpu_custom_call.1} parent=63 // pred_check_branch
          %518 = sbr.rel (%p516) target = $region72
        $region71: #{tpu_custom_call.1} parent=63 // pred_region
          %520 = dma.done %s512, 128
        $region72: #{tpu_custom_call.1} parent=63 // pred_fallthru
          _
        %s521 = sand.u32 %s38, 1
        %s522 = scalar_lea.sflag [#allocation10], %s521
        %s523 = sand.u32 %s112, 1
        %s524 = smul.addr %s523, 8
        %s525 = scalar_lea.vmem [#allocation11], %s524
        // Predicated region
        $region73: #{tpu_custom_call.1} parent=63 // pred_check
          %p526 = pneg %p125
        $region74: #{tpu_custom_call.1} parent=63 // pred_check_branch
          %528 = sbr.rel (%p526) target = $region76
        $region75: #{tpu_custom_call.1} parent=63 // pred_region
          %530 = dma.done %s522, 128
        $region76: #{tpu_custom_call.1} parent=63 // pred_fallthru
          _
        // Predicated region
        $region77: #{tpu_custom_call.1} parent=63 // pred_check
          %p531 = pneg %p146
        $region78: #{tpu_custom_call.1} parent=63 // pred_check_branch
          %533 = sbr.rel (%p531) target = $region80
        $region79: #{tpu_custom_call.1} parent=63 // pred_region
          %535 = dma.done [#allocation13], 256
        $region80: #{tpu_custom_call.1} parent=63 // pred_fallthru
          _
        // Predicated region
        $region81: #{tpu_custom_call.1} parent=63 // pred_check
          %p536 = pneg %p167
        $region82: #{tpu_custom_call.1} parent=63 // pred_check_branch
          %538 = sbr.rel (%p536) target = $region84
        $region83: #{tpu_custom_call.1} parent=63 // pred_region
          %540 = dma.done [#allocation13], 256
        $region84: #{tpu_custom_call.1} parent=63 // pred_fallthru
          _
        // Predicated region
        $region85: #{tpu_custom_call.1} parent=63 // pred_check
          %p541 = pneg %p188
        $region86: #{tpu_custom_call.1} parent=63 // pred_check_branch
          %543 = sbr.rel (%p541) target = $region88
        $region87: #{tpu_custom_call.1} parent=63 // pred_region
          %545 = dma.done [#allocation16], 256
        $region88: #{tpu_custom_call.1} parent=63 // pred_fallthru
          _
        // Predicated region
        $region89: #{tpu_custom_call.1} parent=63 // pred_check
          %p546 = pneg %p209
        $region90: #{tpu_custom_call.1} parent=63 // pred_check_branch
          %548 = sbr.rel (%p546) target = $region92
        $region91: #{tpu_custom_call.1} parent=63 // pred_region
          %550 = dma.done [#allocation16], 256
        $region92: #{tpu_custom_call.1} parent=63 // pred_fallthru
          _
        %s551 = sand.u32 %s60, 1
        %s552 = scalar_lea.sflag [#allocation7], %s551
        %s553 = sand.u32 %s60, 1
        %s554 = smul.addr %s553, 8
        %s555 = scalar_lea.vmem [#allocation6], %s554
        %p556 = pneg %p73
        %p557 = pneg %p70
        %s558 = sand.u32 %s38, 1
        %s559 = scalar_lea.sflag [#allocation10], %s558
        %s560 = sand.u32 %s86, 1
        %s561 = smul.addr %s560, 8
        %s562 = scalar_lea.vmem [#allocation9], %s561
        %p563 = pneg %p99
        %p564 = pneg %p96
        %s565 = sand.u32 %s38, 1
        %s566 = scalar_lea.sflag [#allocation10], %s565
        %s567 = sand.u32 %s112, 1
        %s568 = smul.addr %s567, 8
        %s569 = scalar_lea.vmem [#allocation11], %s568
        %p570 = pneg %p125
        %p571 = pneg %p122
        %p572 = pneg %p146
        %p573 = pneg %p143
        %p574 = pneg %p167
        %p575 = pneg %p164
        %p576 = pneg %p188
        %p577 = pneg %p185
        %p578 = pneg %p209
        %p579 = pneg %p206
        %p580 = pneg %p230
        %p581 = pneg %p227
        %p582 = pneg %p251
        %p583 = pneg %p248
        %p584 = pneg %p272
        %p585 = pneg %p269
        %p586 = pneg %p293
        %p587 = pneg %p290
        %p588 = pneg %p321
        %p589 = pneg %p318
        %s590 = sand.u32 %s308, 1
        %s591 = scalar_lea.sflag [#allocation8], %s590
        %s592 = sand.u32 %s308, 1
        %s593 = smul.addr %s592, 8
        %s594 = scalar_lea.vmem [#allocation18], %s593
        %p595 = pneg %p349
        %p596 = pneg %p346
        %s597 = sand.u32 %s336, 1
        %s598 = scalar_lea.sflag [#allocation20], %s597
        %s599 = sand.u32 %s336, 1
        %s600 = smul.addr %s599, 8
        %s601 = scalar_lea.vmem [#allocation19], %s600
        %p603 = scmp.eq.s32.totalorder %s43, 0
        // Predicated region
        $region93: #{tpu_custom_call.1} parent=63 // pred_check
          %p604 = pneg %p603
        $region94: #{tpu_custom_call.1} parent=63 // pred_check_branch
          %606 = sbr.rel (%p604) target = $region96
        $region95: #{tpu_custom_call.1} parent=63 // pred_region
          %v607 = vld [vmem:[%s515] sm:$0xff]
          %v608 = vpack.c.bf16 %v607, %v607
          %v609 = vld [vmem:[#allocation14] sm:$0xf]
          %v610 = vld [vmem:[#allocation14 + $0x4] sm:$0xf]
          %v611 = vld [vmem:[#allocation14 + $0x8] sm:$0xf]
          %v612 = vld [vmem:[#allocation14 + $0xc] sm:$0xf]
          %v613 = vld [vmem:[%s8] sm:$0x1]
          %v615 = vperm.slane %v613, 0
          %v621 = vunpack.c.l.b16 %v609
          %v622 = vunpack.c.l.b16 %v610
          %v623 = vunpack.c.l.b16 %v611
          %v624 = vunpack.c.l.b16 %v612
          %v625 = vpack.c.b16 %v622, %v621
          %v626 = vpack.c.b16 %v624, %v623
          %vm629 = vcmask 261120
          %v631 = vsel %vm629, %v608, 0
          %633 = vmatpush.bf16.msra.mxu0 0
          %634 = vmatpush.bf16.msra.mxu0 0
          %635 = vmatpush.bf16.msra.mxu0 0
          %636 = vmatpush.bf16.msra.mxu0 0
          %637 = vmatpush.bf16.msra.mxu0 0
          %638 = vmatpush.bf16.msra.mxu0 0
          %639 = vmatpush.bf16.msra.mxu0 %v626
          %640 = vmatpush.bf16.msra.mxu0 %v625
          %641 = vmatmul.bf16.gmra.mxu0 %v631
          %v642 = vpop.f32.mrf.mxu0
          %v643 = vadd.f32 %v615, %v642
          %v644 = vpop.f32.mrf.mxu0
          %645 = vdwg.mxu0
          %v646 = vld [vmem:[%s525] sm:$0xff]
          %v647 = vpack.c.bf16 %v646, %v646
          %v648 = vld [vmem:[#allocation15] sm:$0xf]
          %v649 = vld [vmem:[#allocation15 + $0x4] sm:$0xf]
          %v650 = vld [vmem:[#allocation15 + $0x8] sm:$0xf]
          %v651 = vld [vmem:[#allocation15 + $0xc] sm:$0xf]
          %v652 = vld [vmem:[%s9] sm:$0x1]
          %v654 = vperm.slane %v652, 0
          %v660 = vunpack.c.l.b16 %v648
          %v661 = vunpack.c.l.b16 %v649
          %v662 = vunpack.c.l.b16 %v650
          %v663 = vunpack.c.l.b16 %v651
          %v664 = vpack.c.b16 %v661, %v660
          %v665 = vpack.c.b16 %v663, %v662
          %v669 = vsel %vm629, %v647, 0
          %671 = vmatpush.bf16.msra.mxu0 0
          %672 = vmatpush.bf16.msra.mxu0 0
          %673 = vmatpush.bf16.msra.mxu0 0
          %674 = vmatpush.bf16.msra.mxu0 0
          %675 = vmatpush.bf16.msra.mxu0 0
          %676 = vmatpush.bf16.msra.mxu0 0
          %677 = vmatpush.bf16.msra.mxu0 %v665
          %678 = vmatpush.bf16.msra.mxu0 %v664
          %679 = vmatmul.bf16.gmra.mxu0 %v669
          %v680 = vpop.f32.mrf.mxu0
          %v681 = vadd.f32 %v654, %v680
          %v682 = vpop.f32.mrf.mxu0
          %683 = vdwg.mxu0
          %v684 = vpack.c.bf16 %v643, %v643
          %vm685 = vcmask 257024
          %686 = vst.msk [vmem:[#allocation2] sm:$0xf] %vm685, %v684
          %v687 = vpack.c.bf16 %v681, %v681
          %688 = vst.msk [vmem:[#allocation3] sm:$0xf] %vm685, %v687
        $region96: #{tpu_custom_call.1} parent=63 // pred_fallthru
          _
        %v689 = vld [vmem:[%s505] sm:$0xff]
        %v690 = vpack.c.bf16 %v689, %v689
        %v691 = vld [vmem:[#allocation12] sm:$0xf]
        %v692 = vld [vmem:[#allocation12 + $0x4] sm:$0xf]
        %v693 = vld [vmem:[#allocation12 + $0x8] sm:$0xf]
        %v694 = vld [vmem:[#allocation12 + $0xc] sm:$0xf]
        %v695 = vld [vmem:[%s7] sm:$0x1]
        %v697 = vperm.slane %v695, 0
        %v703 = vunpack.c.l.b16 %v691
        %v704 = vunpack.c.l.b16 %v692
        %v705 = vunpack.c.l.b16 %v693
        %v706 = vunpack.c.l.b16 %v694
        %v707 = vpack.c.b16 %v704, %v703
        %v708 = vpack.c.b16 %v706, %v705
        %vm711 = vcmask 261120
        %v713 = vsel %vm711, %v690, 0
        %715 = vmatpush.bf16.msra.mxu0 0
        %716 = vmatpush.bf16.msra.mxu0 0
        %717 = vmatpush.bf16.msra.mxu0 0
        %718 = vmatpush.bf16.msra.mxu0 0
        %719 = vmatpush.bf16.msra.mxu0 0
        %720 = vmatpush.bf16.msra.mxu0 0
        %721 = vmatpush.bf16.msra.mxu0 %v708
        %722 = vmatpush.bf16.msra.mxu0 %v707
        %723 = vmatmul.bf16.gmra.mxu0 %v713
        %v724 = vpop.f32.mrf.mxu0
        %v725 = vadd.f32 %v697, %v724
        %v726 = vpop.f32.mrf.mxu0
        %727 = vdwg.mxu0
        %v728 = vpack.c.bf16 %v725, %v725
        %v729 = vld [vmem:[#allocation2] sm:$0xf]
        %v730 = vld [vmem:[#allocation3] sm:$0xf]
        %v731 = vld [vmem:[#allocation17] sm:$0xf]
        %v732 = vld [vmem:[#allocation17 + $0x4] sm:$0xf]
        %v733 = vld [vmem:[#allocation17 + $0x8] sm:$0xf]
        %v734 = vld [vmem:[#allocation17 + $0xc] sm:$0xf]
        %735 = vst.msk [vmem:[#allocation4] sm:$0xff] %vm711, 0.0
        %vm736 = vcmask 64512
        %737 = vst.msk [vmem:[#allocation5] sm:$0xff] %vm736, 0.0
        %v739 = vsel %vm736, %v728, 0
        %v742 = vsel %vm736, %v729, 0
        %744 = vmatpush.bf16.xpose.msra.mxu0 0
        %745 = vmatpush.bf16.xpose.msra.mxu0 0
        %746 = vmatpush.bf16.xpose.msra.mxu0 0
        %747 = vmatpush.bf16.xpose.msra.mxu0 0
        %748 = vmatpush.bf16.xpose.msra.mxu0 0
        %749 = vmatpush.bf16.xpose.msra.mxu0 0
        %750 = vmatpush.bf16.xpose.msra.mxu0 0
        %751 = vmatpush.bf16.xpose.msra.mxu0 %v742
        %752 = vmatmul.bf16.gmra.mxu0 %v739
        %v753 = vpop.f32.mrf.mxu0
        %v754 = vadd.f32 0.0, %v753
        %v755 = vpop.f32.mrf.mxu0
        %756 = vdwg.mxu0
        %v757 = vsel %vm736, %v754, -inf
        %758 = vmax.xlane.f32.xlu0 %v757
        %v759 = vpop.xlane.xlu0 %758
        %v760 = vsub.f32 %v754, %v759
        %v761 = vmul.f32 %v760, 1.442695
        %v762 = vpow.pop %v761
        %v763 = vsel %vm736, %v762, 0.0
        %764 = vadd.xlane.f32.xlu0 %v763
        %v765 = vpop.xlane.xlu0 %764
        %v766 = vrcp.pop %v765
        %v767 = vmul.f32 %v762, %v766
        %v768 = vpack.c.bf16 %v767, %v767
        %v770 = vsel %vm736, %v768, 0
        %vm772 = vcmask 1043456
        %v774 = vsel %vm772, %v730, 0
        %776 = vmatpush.bf16.msra.mxu0 0
        %777 = vmatpush.bf16.msra.mxu0 0
        %778 = vmatpush.bf16.msra.mxu0 0
        %779 = vmatpush.bf16.msra.mxu0 0
        %780 = vmatpush.bf16.msra.mxu0 0
        %781 = vmatpush.bf16.msra.mxu0 0
        %782 = vmatpush.bf16.msra.mxu0 0
        %783 = vmatpush.bf16.msra.mxu0 %v774
        %784 = vmatmul.bf16.gmra.mxu0 %v770
        %v785 = vpop.f32.mrf.mxu0
        %v786 = vadd.f32 0.0, %v785
        %v787 = vpop.f32.mrf.mxu0
        %788 = vdwg.mxu0
        %v789 = vld [vmem:[#allocation4] sm:$0xff]
        %v790 = vpack.c.bf16 %v786, %v786
        %v792 = vsel %vm736, %v790, 0
        %v795 = vsel %vm772, %v731, 0
        %797 = vmatpush.bf16.msra.mxu0 0
        %798 = vmatpush.bf16.msra.mxu0 0
        %799 = vmatpush.bf16.msra.mxu0 0
        %800 = vmatpush.bf16.msra.mxu0 0
        %801 = vmatpush.bf16.msra.mxu0 0
        %802 = vmatpush.bf16.msra.mxu0 0
        %803 = vmatpush.bf16.msra.mxu0 0
        %804 = vmatpush.bf16.msra.mxu0 %v795
        %805 = vmatmul.bf16.gmra.mxu0 %v792
        %v806 = vpop.f32.mrf.mxu0
        %v807 = vadd.f32 0.0, %v806
        %v808 = vpop.f32.mrf.mxu0
        %809 = vdwg.mxu0
        %v810 = vadd.f32 %v789, %v807
        %811 = vst.msk [vmem:[#allocation4] sm:$0xff] %vm711, %v810
        %v812 = vld [vmem:[#allocation5] sm:$0xff]
        %v813 = vadd.f32 %v812, %v767
        %814 = vst.msk [vmem:[#allocation5] sm:$0xff] %vm736, %v813
        %v816 = vunpack.c.l.b16 %v728
        %v817 = vpack.c.b16 %v816, %v816
        %818 = vrot.lane.b32.xlu0 %v817, 120
        %v819 = vpop.permute.xlu0 %818
        %v821 = vunpack.c.l.b16 %v729
        %v822 = vpack.c.b16 %v821, %v821
        %823 = vrot.lane.b32.xlu0 %v822, 120
        %v824 = vpop.permute.xlu0 %823
        %v826 = vsel %vm736, %v819, 0
        %v829 = vsel %vm736, %v824, 0
        %831 = vmatpush.bf16.xpose.msra.mxu0 0
        %832 = vmatpush.bf16.xpose.msra.mxu0 0
        %833 = vmatpush.bf16.xpose.msra.mxu0 0
        %834 = vmatpush.bf16.xpose.msra.mxu0 0
        %835 = vmatpush.bf16.xpose.msra.mxu0 0
        %836 = vmatpush.bf16.xpose.msra.mxu0 0
        %837 = vmatpush.bf16.xpose.msra.mxu0 0
        %838 = vmatpush.bf16.xpose.msra.mxu0 %v829
        %839 = vmatmul.bf16.gmra.mxu0 %v826
        %v840 = vpop.f32.mrf.mxu0
        %v841 = vadd.f32 0.0, %v840
        %v842 = vpop.f32.mrf.mxu0
        %843 = vdwg.mxu0
        %v844 = vsel %vm736, %v841, -inf
        %845 = vmax.xlane.f32.xlu0 %v844
        %v846 = vpop.xlane.xlu0 %845
        %v847 = vsub.f32 %v841, %v846
        %v848 = vmul.f32 %v847, 1.442695
        %v849 = vpow.pop %v848
        %v850 = vsel %vm736, %v849, 0.0
        %851 = vadd.xlane.f32.xlu0 %v850
        %v852 = vpop.xlane.xlu0 %851
        %v853 = vrcp.pop %v852
        %v854 = vmul.f32 %v849, %v853
        %v855 = vpack.c.bf16 %v854, %v854
        %v857 = vunpack.c.l.b16 %v730
        %v858 = vpack.c.b16 %v857, %v857
        %859 = vrot.lane.b32.xlu0 %v858, 120
        %v860 = vpop.permute.xlu0 %859
        %v862 = vsel %vm736, %v855, 0
        %v865 = vsel %vm772, %v860, 0
        %867 = vmatpush.bf16.msra.mxu0 0
        %868 = vmatpush.bf16.msra.mxu0 0
        %869 = vmatpush.bf16.msra.mxu0 0
        %870 = vmatpush.bf16.msra.mxu0 0
        %871 = vmatpush.bf16.msra.mxu0 0
        %872 = vmatpush.bf16.msra.mxu0 0
        %873 = vmatpush.bf16.msra.mxu0 0
        %874 = vmatpush.bf16.msra.mxu0 %v865
        %875 = vmatmul.bf16.gmra.mxu0 %v862
        %v876 = vpop.f32.mrf.mxu0
        %v877 = vadd.f32 0.0, %v876
        %v878 = vpop.f32.mrf.mxu0
        %879 = vdwg.mxu0
        %v880 = vld [vmem:[#allocation4] sm:$0xff]
        %v881 = vpack.c.bf16 %v877, %v877
        %v883 = vsel %vm736, %v881, 0
        %v886 = vsel %vm772, %v732, 0
        %888 = vmatpush.bf16.msra.mxu0 0
        %889 = vmatpush.bf16.msra.mxu0 0
        %890 = vmatpush.bf16.msra.mxu0 0
        %891 = vmatpush.bf16.msra.mxu0 0
        %892 = vmatpush.bf16.msra.mxu0 0
        %893 = vmatpush.bf16.msra.mxu0 0
        %894 = vmatpush.bf16.msra.mxu0 0
        %895 = vmatpush.bf16.msra.mxu0 %v886
        %896 = vmatmul.bf16.gmra.mxu0 %v883
        %v897 = vpop.f32.mrf.mxu0
        %v898 = vadd.f32 0.0, %v897
        %v899 = vpop.f32.mrf.mxu0
        %900 = vdwg.mxu0
        %v901 = vadd.f32 %v880, %v898
        %902 = vst.msk [vmem:[#allocation4] sm:$0xff] %vm711, %v901
        %v903 = vld [vmem:[#allocation5] sm:$0xff]
        %v904 = vadd.f32 %v903, %v854
        %905 = vst.msk [vmem:[#allocation5] sm:$0xff] %vm736, %v904
        %906 = vrot.lane.b32.xlu0 %v817, 112
        %v907 = vpop.permute.xlu0 %906
        %908 = vrot.lane.b32.xlu0 %v822, 112
        %v909 = vpop.permute.xlu0 %908
        %v911 = vsel %vm736, %v907, 0
        %v914 = vsel %vm736, %v909, 0
        %916 = vmatpush.bf16.xpose.msra.mxu0 0
        %917 = vmatpush.bf16.xpose.msra.mxu0 0
        %918 = vmatpush.bf16.xpose.msra.mxu0 0
        %919 = vmatpush.bf16.xpose.msra.mxu0 0
        %920 = vmatpush.bf16.xpose.msra.mxu0 0
        %921 = vmatpush.bf16.xpose.msra.mxu0 0
        %922 = vmatpush.bf16.xpose.msra.mxu0 0
        %923 = vmatpush.bf16.xpose.msra.mxu0 %v914
        %924 = vmatmul.bf16.gmra.mxu0 %v911
        %v925 = vpop.f32.mrf.mxu0
        %v926 = vadd.f32 0.0, %v925
        %v927 = vpop.f32.mrf.mxu0
        %928 = vdwg.mxu0
        %v929 = vsel %vm736, %v926, -inf
        %930 = vmax.xlane.f32.xlu0 %v929
        %v931 = vpop.xlane.xlu0 %930
        %v932 = vsub.f32 %v926, %v931
        %v933 = vmul.f32 %v932, 1.442695
        %v934 = vpow.pop %v933
        %v935 = vsel %vm736, %v934, 0.0
        %936 = vadd.xlane.f32.xlu0 %v935
        %v937 = vpop.xlane.xlu0 %936
        %v938 = vrcp.pop %v937
        %v939 = vmul.f32 %v934, %v938
        %v940 = vpack.c.bf16 %v939, %v939
        %941 = vrot.lane.b32.xlu0 %v858, 112
        %v942 = vpop.permute.xlu0 %941
        %v944 = vsel %vm736, %v940, 0
        %v947 = vsel %vm772, %v942, 0
        %949 = vmatpush.bf16.msra.mxu0 0
        %950 = vmatpush.bf16.msra.mxu0 0
        %951 = vmatpush.bf16.msra.mxu0 0
        %952 = vmatpush.bf16.msra.mxu0 0
        %953 = vmatpush.bf16.msra.mxu0 0
        %954 = vmatpush.bf16.msra.mxu0 0
        %955 = vmatpush.bf16.msra.mxu0 0
        %956 = vmatpush.bf16.msra.mxu0 %v947
        %957 = vmatmul.bf16.gmra.mxu0 %v944
        %v958 = vpop.f32.mrf.mxu0
        %v959 = vadd.f32 0.0, %v958
        %v960 = vpop.f32.mrf.mxu0
        %961 = vdwg.mxu0
        %v962 = vld [vmem:[#allocation4] sm:$0xff]
        %v963 = vpack.c.bf16 %v959, %v959
        %v965 = vsel %vm736, %v963, 0
        %v968 = vsel %vm772, %v733, 0
        %970 = vmatpush.bf16.msra.mxu0 0
        %971 = vmatpush.bf16.msra.mxu0 0
        %972 = vmatpush.bf16.msra.mxu0 0
        %973 = vmatpush.bf16.msra.mxu0 0
        %974 = vmatpush.bf16.msra.mxu0 0
        %975 = vmatpush.bf16.msra.mxu0 0
        %976 = vmatpush.bf16.msra.mxu0 0
        %977 = vmatpush.bf16.msra.mxu0 %v968
        %978 = vmatmul.bf16.gmra.mxu0 %v965
        %v979 = vpop.f32.mrf.mxu0
        %v980 = vadd.f32 0.0, %v979
        %v981 = vpop.f32.mrf.mxu0
        %982 = vdwg.mxu0
        %v983 = vadd.f32 %v962, %v980
        %984 = vst.msk [vmem:[#allocation4] sm:$0xff] %vm711, %v983
        %v985 = vld [vmem:[#allocation5] sm:$0xff]
        %v986 = vadd.f32 %v985, %v939
        %987 = vst.msk [vmem:[#allocation5] sm:$0xff] %vm736, %v986
        %988 = vrot.lane.b32.xlu0 %v817, 104
        %v989 = vpop.permute.xlu0 %988
        %990 = vrot.lane.b32.xlu0 %v822, 104
        %v991 = vpop.permute.xlu0 %990
        %v993 = vsel %vm736, %v989, 0
        %v996 = vsel %vm736, %v991, 0
        %998 = vmatpush.bf16.xpose.msra.mxu0 0
        %999 = vmatpush.bf16.xpose.msra.mxu0 0
        %1000 = vmatpush.bf16.xpose.msra.mxu0 0
        %1001 = vmatpush.bf16.xpose.msra.mxu0 0
        %1002 = vmatpush.bf16.xpose.msra.mxu0 0
        %1003 = vmatpush.bf16.xpose.msra.mxu0 0
        %1004 = vmatpush.bf16.xpose.msra.mxu0 0
        %1005 = vmatpush.bf16.xpose.msra.mxu0 %v996
        %1006 = vmatmul.bf16.gmra.mxu0 %v993
        %v1007 = vpop.f32.mrf.mxu0
        %v1008 = vadd.f32 0.0, %v1007
        %v1009 = vpop.f32.mrf.mxu0
        %1010 = vdwg.mxu0
        %v1011 = vsel %vm736, %v1008, -inf
        %1012 = vmax.xlane.f32.xlu0 %v1011
        %v1013 = vpop.xlane.xlu0 %1012
        %v1014 = vsub.f32 %v1008, %v1013
        %v1015 = vmul.f32 %v1014, 1.442695
        %v1016 = vpow.pop %v1015
        %v1017 = vsel %vm736, %v1016, 0.0
        %1018 = vadd.xlane.f32.xlu0 %v1017
        %v1019 = vpop.xlane.xlu0 %1018
        %v1020 = vrcp.pop %v1019
        %v1021 = vmul.f32 %v1016, %v1020
        %v1022 = vpack.c.bf16 %v1021, %v1021
        %1023 = vrot.lane.b32.xlu0 %v858, 104
        %v1024 = vpop.permute.xlu0 %1023
        %v1026 = vsel %vm736, %v1022, 0
        %v1029 = vsel %vm772, %v1024, 0
        %1031 = vmatpush.bf16.msra.mxu0 0
        %1032 = vmatpush.bf16.msra.mxu0 0
        %1033 = vmatpush.bf16.msra.mxu0 0
        %1034 = vmatpush.bf16.msra.mxu0 0
        %1035 = vmatpush.bf16.msra.mxu0 0
        %1036 = vmatpush.bf16.msra.mxu0 0
        %1037 = vmatpush.bf16.msra.mxu0 0
        %1038 = vmatpush.bf16.msra.mxu0 %v1029
        %1039 = vmatmul.bf16.gmra.mxu0 %v1026
        %v1040 = vpop.f32.mrf.mxu0
        %v1041 = vadd.f32 0.0, %v1040
        %v1042 = vpop.f32.mrf.mxu0
        %1043 = vdwg.mxu0
        %v1044 = vld [vmem:[#allocation4] sm:$0xff]
        %v1045 = vpack.c.bf16 %v1041, %v1041
        %v1047 = vsel %vm736, %v1045, 0
        %v1050 = vsel %vm772, %v734, 0
        %1052 = vmatpush.bf16.msra.mxu0 0
        %1053 = vmatpush.bf16.msra.mxu0 0
        %1054 = vmatpush.bf16.msra.mxu0 0
        %1055 = vmatpush.bf16.msra.mxu0 0
        %1056 = vmatpush.bf16.msra.mxu0 0
        %1057 = vmatpush.bf16.msra.mxu0 0
        %1058 = vmatpush.bf16.msra.mxu0 0
        %1059 = vmatpush.bf16.msra.mxu0 %v1050
        %1060 = vmatmul.bf16.gmra.mxu0 %v1047
        %v1061 = vpop.f32.mrf.mxu0
        %v1062 = vadd.f32 0.0, %v1061
        %v1063 = vpop.f32.mrf.mxu0
        %1064 = vdwg.mxu0
        %v1065 = vadd.f32 %v1044, %v1062
        %1066 = vst.msk [vmem:[#allocation4] sm:$0xff] %vm711, %v1065
        %v1067 = vld [vmem:[#allocation5] sm:$0xff]
        %v1068 = vadd.f32 %v1067, %v1021
        %1069 = vst.msk [vmem:[#allocation5] sm:$0xff] %vm736, %v1068
        %v1070 = vld [vmem:[#allocation4] sm:$0xff]
        %v1071 = vld [vmem:[%s10] sm:$0x1]
        %v1073 = vperm.slane %v1071, 0
        %v1075 = vadd.f32 %v1070, %v1073
        %1076 = vst.msk [vmem:[%s594] sm:$0xff] %vm711, %v1075
        %v1077 = vld [vmem:[#allocation5] sm:$0xff]
        %v1078 = vmul.f32 %v1077, 0.25
        %1079 = vst.msk [vmem:[%s601] sm:$0xff] %vm736, %v1078
        %s1080 = sand.u32 %s308, 1
        %s1081 = scalar_lea.sflag [#allocation8], %s1080
        %s1082 = sand.u32 %s308, 1
        %s1083 = smul.addr %s1082, 8
        %s1084 = scalar_lea.vmem [#allocation18], %s1083
        %s1085 = sand.u32 %s336, 1
        %s1086 = scalar_lea.sflag [#allocation20], %s1085
        %s1087 = sand.u32 %s336, 1
        %s1088 = smul.addr %s1087, 8
        %s1089 = scalar_lea.vmem [#allocation19], %s1088
        // Predicated region
        $region97: #{tpu_custom_call.1} parent=63 // pred_check
          %p1090 = pneg %p318
        $region98: #{tpu_custom_call.1} parent=63 // pred_check_branch
          %1092 = sbr.rel (%p1090) target = $region100
        $region99: #{tpu_custom_call.1} parent=63 // pred_region
          %1094 = vsyncadd %s1081, 0
          %s1095 = sadd.s32 %s43, %s42
          %s1096 = smul.addr %s1095, 8
          %s1097 = scalar_lea.hbm %s11, %s1096
          %s1099 = sshll.u32 %s1084, 4
          %s1100 = int_to_ptr.vmem [resolvable:$true] %s1099
          %s1101 = sshll.u32 %s1097, 4
          %s1102 = int_to_ptr.hbm [resolvable:$true] %s1101
          %1104 = dma.vmem_to_hbm [thread:$0]  %s1100, 128, %s1102, %s1081
        $region100: #{tpu_custom_call.1} parent=63 // pred_fallthru
          _
        // Predicated region
        $region101: #{tpu_custom_call.1} parent=63 // pred_check
          %p1105 = pneg %p346
        $region102: #{tpu_custom_call.1} parent=63 // pred_check_branch
          %1107 = sbr.rel (%p1105) target = $region104
        $region103: #{tpu_custom_call.1} parent=63 // pred_region
          %1109 = vsyncadd %s1086, 0
          %s1110 = sadd.s32 %s43, %s42
          %s1111 = smul.addr %s1110, 8
          %s1112 = scalar_lea.hbm %s12, %s1111
          %s1114 = sshll.u32 %s1089, 4
          %s1115 = int_to_ptr.vmem [resolvable:$true] %s1114
          %s1116 = sshll.u32 %s1112, 4
          %s1117 = int_to_ptr.hbm [resolvable:$true] %s1116
          %1119 = dma.vmem_to_hbm [thread:$0]  %s1115, 128, %s1117, %s1086
        $region104: #{tpu_custom_call.1} parent=63 // pred_fallthru
          _
      $region64: #{tpu_custom_call.1} parent=5 // pred_fallthru
        _
      %p1120 = scmp.le.s32.totalorder 2, %s33
      // Predicated region
      $region105: #{tpu_custom_call.1} parent=5 // pred_check
        %p1121 = pneg %p1120
      $region106: #{tpu_custom_call.1} parent=5 // pred_check_branch
        %1123 = sbr.rel (%p1121) target = $region108
      $region107: #{tpu_custom_call.1} parent=5 // pred_region
        %s1124 = ssub.s32 %s33, 2
        // Predicated region
        $region109: #{tpu_custom_call.1} parent=107 // pred_check
          %p1125 = pneg %p324
        $region110: #{tpu_custom_call.1} parent=107 // pred_check_branch
          %1127 = sbr.rel (%p1125) target = $region112
        $region111: #{tpu_custom_call.1} parent=107 // pred_region
          %s1128 = sand.u32 %s309, 1
          %s1129 = scalar_lea.sflag [#allocation8], %s1128
          %s1130 = sand.u32 %s309, 1
          %s1131 = smul.addr %s1130, 8
          %s1132 = scalar_lea.vmem [#allocation18], %s1131
          %1134 = dma.done %s1129, 128
        $region112: #{tpu_custom_call.1} parent=107 // pred_fallthru
          _
        // Predicated region
        $region113: #{tpu_custom_call.1} parent=107 // pred_check
          %p1135 = pneg %p352
        $region114: #{tpu_custom_call.1} parent=107 // pred_check_branch
          %1137 = sbr.rel (%p1135) target = $region116
        $region115: #{tpu_custom_call.1} parent=107 // pred_region
          %s1138 = sand.u32 %s337, 1
          %s1139 = scalar_lea.sflag [#allocation20], %s1138
          %s1140 = sand.u32 %s337, 1
          %s1141 = smul.addr %s1140, 8
          %s1142 = scalar_lea.vmem [#allocation19], %s1141
          %1144 = dma.done %s1139, 128
        $region116: #{tpu_custom_call.1} parent=107 // pred_fallthru
          _
      $region108: #{tpu_custom_call.1} parent=5 // pred_fallthru
        _
    $region6: #{tpu_custom_call.1} parent=1 // loop_footer
      %s37 = sadd.s32 1, %s33
    $region7: #{tpu_custom_call.1} parent=1 // loop_footer_branch
      %32 = sbr.rel target = $region3
    $region8: #{tpu_custom_call.1} parent=1 // loop_exit
      _
    %1145 = vsyncpa [#allocation7], 1
    %s1146 = scalar_lea.sflag [#allocation7], 1
    %1147 = vsyncpa %s1146, 1
    %1148 = vsyncpa [#allocation10], 1
    %s1149 = scalar_lea.sflag [#allocation10], 1
    %1150 = vsyncpa %s1149, 1
    %1151 = vsyncpa [#allocation13], 1
    %1152 = vsyncpa [#allocation16], 1
    %1153 = vsyncpa [#allocation8], 1
    %s1154 = scalar_lea.sflag [#allocation8], 1
    %1155 = vsyncpa %s1154, 1
    %1156 = vsyncpa [#allocation20], 1
    %s1157 = scalar_lea.sflag [#allocation20], 1
    %1158 = vsyncpa %s1157, 1

</llo_original>
